<compile_context>
chip_gen: v7x
topology: tpu7x:2x2x1
jax: 0.10.0
libtpu: 0.0.40
codegen_flags: <defaults>
</compile_context>

<pallas_src>
import functools

import jax
import jax.numpy as jnp
from jax.experimental import pallas as pl
from jax.experimental.pallas import tpu as pltpu

_F32 = jnp.float32
_BF16 = jnp.bfloat16


# ----------------------------------------------------------------------------
# Fused kernel: encoder -> reparameterize -> decoder MLP -> 6D->3x3 rot decode
# ----------------------------------------------------------------------------
def _vposer_fused_kernel(
    x_ref, eps_ref,
    fc1_w_ref, fc1_b_ref,
    fc2_w_ref, fc2_b_ref,
    head_w_ref, head_b_ref,
    d1_w_ref, d1_b_ref,
    d2_w_ref, d2_b_ref,
    do_w_ref, do_b_ref,
    perm_ref,
    pose_ref, meanstd_ref,
    *, latentD, num_joints):
  L, J = latentD, num_joints

  def lrelu(v):
    # negative_slope=0.2: max(v, 0.2*v) == leaky_relu(v) for slope in (0,1)
    return jnp.maximum(v, 0.2 * v)

  def mm(a, w_ref):
    # Operands in the weight's dtype (bf16 or f32), f32 accumulation.
    return jnp.dot(a.astype(w_ref.dtype), w_ref[...],
                   preferred_element_type=jnp.float32)

  x = x_ref[...]                                           # (tile, F) bf16

  # Encoder. BN1/BN2 folded into fc1/fc2; Dropout(p=0.1) = identity in eval.
  h = lrelu(mm(x, fc1_w_ref) + fc1_b_ref[...])             # (tile, H)
  h = lrelu(mm(h, fc2_w_ref) + fc2_b_ref[...])             # (tile, H)

  # Fused [mu | pad | logvar] head -> single MXU pass; logvar starts at a
  # 128-lane boundary so both slices below are lane-group aligned.
  ml = mm(h, head_w_ref) + head_b_ref[...]                 # (tile, LP + L)
  LP = head_w_ref.shape[1] - L
  mu = ml[:, :L]
  lv = ml[:, LP:]
  # softplus (stable): max(x,0) + log1p(exp(-|x|))
  std = jnp.maximum(lv, 0.0) + jnp.log1p(jnp.exp(-jnp.abs(lv)))
  z = mu + eps_ref[...].astype(jnp.float32) * std          # rsample

  # Decoder MLP (dropout = identity in eval).
  d = lrelu(mm(z, d1_w_ref) + d1_b_ref[...])               # (tile, H)
  d = lrelu(mm(d, d2_w_ref) + d2_b_ref[...])               # (tile, H)
  x6 = mm(d, do_w_ref) + do_b_ref[...]                     # (tile, 6*J) planar, f32

  # Fused ContinousRotReprDecoder (Gram-Schmidt + cross) on J-wide lane slabs.
  # Planar slab k == per-joint 6D component k: cols [r00,r01,r10,r11,r20,r21]
  # -> col0=(a0,a1,a2), col1=(c0,c1,c2).
  a0 = x6[:, 0 * J:1 * J]; c0 = x6[:, 1 * J:2 * J]
  a1 = x6[:, 2 * J:3 * J]; c1 = x6[:, 3 * J:4 * J]
  a2 = x6[:, 4 * J:5 * J]; c2 = x6[:, 5 * J:6 * J]

  # b1 = normalize(col0): rsqrt-multiply (EUP slot); clamp matches F.normalize.
  inv1 = jax.lax.rsqrt(jnp.maximum(a0 * a0 + a1 * a1 + a2 * a2, 1e-24))
  u0, u1, u2 = a0 * inv1, a1 * inv1, a2 * inv1
  dp = u0 * c0 + u1 * c1 + u2 * c2
  w0, w1, w2 = c0 - dp * u0, c1 - dp * u1, c2 - dp * u2
  inv2 = jax.lax.rsqrt(jnp.maximum(w0 * w0 + w1 * w1 + w2 * w2, 1e-24))
  v0, v1, v2 = w0 * inv2, w1 * inv2, w2 * inv2
  # b3 = cross(b1, b2)
  b30 = u1 * v2 - u2 * v1
  b31 = u2 * v0 - u0 * v2
  b32 = u0 * v1 - u1 * v0

  # Planar (tile, 9*J): slab m holds rot-component m of every joint, in the
  # torch order [b1_0,b2_0,b3_0, b1_1,b2_1,b3_1, b1_2,b2_2,b3_2].
  planar = jnp.concatenate([u0, v0, b30, u1, v1, b31, u2, v2, b32], axis=1)
  # Joint-major interleave (col j*9+m) via exact 0/1 permutation matmul on the
  # (underfed) MXU -> wrapper reshape to (N,1,J,9) is free, no HBM transpose.
  pose_ref[...] = jnp.dot(planar, perm_ref[...],
                          preferred_element_type=jnp.float32)
  # Single lane-dense (tile, 2L) store instead of two L-wide outputs.
  meanstd_ref[...] = jnp.concatenate([mu, std], axis=1)


# ----------------------------------------------------------------------------
# Parameter preparation (host-side, one-time): BN folding, head fusion with
# 128-lane alignment, transposition to (in, out), planar permutation of the
# output layer, interleave permutation matrix.
# ----------------------------------------------------------------------------
def prepare_vposer_params(raw, compute_dtype=jnp.bfloat16):
  def bn_affine(bn):
    gamma, beta, rmean, rvar = bn
    scale = gamma / jnp.sqrt(rvar + 1e-5)
    shift = beta - rmean * scale
    return scale, shift

  def fold(bn, w, b):
    # y = Linear(BN(x)) = x @ (diag(scale) @ W.T) + (shift @ W.T + b)
    scale, shift = bn_affine(bn)
    wt = w.T                                   # (din, dout)
    return wt * scale[:, None], b + shift @ wt

  fc1_w, fc1_b = fold(raw["bn1"], raw["fc1_w"], raw["fc1_b"])
  fc2_w, fc2_b = fold(raw["bn2"], raw["fc2_w"], raw["fc2_b"])

  H = raw["mu_w"].shape[1]
  L = raw["mu_w"].shape[0]
  LP = ((L + 127) // 128) * 128                # logvar half at 128-lane boundary
  head_w = jnp.zeros((H, LP + L), _F32)
  head_w = head_w.at[:, :L].set(raw["mu_w"].T).at[:, LP:].set(raw["lv_w"].T)
  head_b = jnp.zeros((LP + L,), _F32)
  head_b = head_b.at[:L].set(raw["mu_b"]).at[LP:].set(raw["lv_b"])

  d1_w, d1_b = raw["d1_w"].T, raw["d1_b"]
  d2_w, d2_b = raw["d2_w"].T, raw["d2_b"]

  # Output layer: (J*6, H) -> (H, J*6) -> planar (H, 6*J) so that planar
  # column k*J + j == original column j*6 + k.
  J = raw["do_w"].shape[0] // 6
  do_wt = raw["do_w"].T
  do_w = do_wt.reshape(H, J, 6).transpose(0, 2, 1).reshape(H, 6 * J)
  do_b = raw["do_b"].reshape(J, 6).T.reshape(6 * J)

  # Permutation matrix: planar column m*J + j -> interleaved column j*9 + m.
  src = (jnp.arange(9)[:, None] * J + jnp.arange(J)[None, :]).reshape(-1)
  dst = (jnp.arange(J)[None, :] * 9 + jnp.arange(9)[:, None]).reshape(-1)
  perm = jnp.zeros((9 * J, 9 * J), _F32).at[src, dst].set(1.0)

  def w_(w):
    return w.astype(compute_dtype)

  def b_(b):
    return b.reshape(1, -1).astype(_F32)

  return (w_(fc1_w), b_(fc1_b), w_(fc2_w), b_(fc2_b),
          w_(head_w), b_(head_b), w_(d1_w), b_(d1_b),
          w_(d2_w), b_(d2_b),
          do_w.astype(_F32), b_(do_b),        # do_w stays f32 (feeds Gram-Schmidt)
          perm)


# ----------------------------------------------------------------------------
# Wrapper
# ----------------------------------------------------------------------------
@functools.partial(jax.jit, static_argnames=("num_joints", "latentD", "tile_n"))
def vposer_forward(Pin, eps, params, *, num_joints, latentD, tile_n=512):
  N = Pin.shape[0]
  J, L = num_joints, latentD
  # x is only ever a bf16 MXU operand -> stream it at bf16 (halves its traffic).
  x_flat = Pin.reshape(N, -1).astype(_BF16)        # Pin.view(N, -1)
  F_ = x_flat.shape[1]
  H = params[0].shape[1]

  # Batch tile: multiple of 8, large (amortize per-step overhead), but capped
  # at round_up(N/2, 8) so the grid has >= 2 steps for v7x megacore sharding.
  tile_n = max(8, (tile_n // 8) * 8)
  if N <= 8:
    tile = N
  else:
    half = -(-N // 2)
    half = ((half + 7) // 8) * 8
    tile = max(8, min(tile_n, half))
  grid = (pl.cdiv(N, tile),)

  def row_spec(cols):
    return pl.BlockSpec((tile, cols), lambda i: (i, 0))

  def resident_spec(arr):                          # weights stay in VMEM
    return pl.BlockSpec(arr.shape, lambda i: (0,) * arr.ndim)

  in_specs = [row_spec(F_), row_spec(L)] + [resident_spec(p) for p in params]
  out_specs = (row_spec(9 * J), row_spec(2 * L))

  LPL = params[4].shape[1]                         # padded head width (LP + L)
  flops = 2 * N * (F_ * H + H * H + H * LPL + L * H + H * H
                   + H * 6 * J + (9 * J) * (9 * J))
  transcendentals = N * (L + 2 * J)                # softplus exp + 2 rsqrt/joint
  weight_bytes = sum(int(p.size) * p.dtype.itemsize for p in params)
  bytes_accessed = int(
      int(x_flat.size) * 2 + int(eps.size) * 4 + weight_bytes
      + N * (9 * J + 2 * L) * 4)

  # VMEM limit from the actual footprint (double-buffered IO + resident
  # weights + activation scratch), clamped to [16, 64] MiB (v7x has 64 MiB).
  tile_io_bytes = tile * (F_ * 2 + L * 4 + 9 * J * 4 + 2 * L * 4)
  vmem_limit = 2 * weight_bytes + 2 * tile_io_bytes + 10 * tile * H * 4
  vmem_limit = int(min(max(vmem_limit + 4 * 2**20, 16 * 2**20), 64 * 2**20))

  kernel = functools.partial(_vposer_fused_kernel, latentD=L, num_joints=J)

  pose_flat, meanstd = pl.pallas_call(
      kernel,
      grid=grid,
      out_shape=(
          jax.ShapeDtypeStruct((N, 9 * J), _F32),
          jax.ShapeDtypeStruct((N, 2 * L), _F32),
      ),
      in_specs=in_specs,
      out_specs=out_specs,
      compiler_params=pltpu.CompilerParams(
          dimension_semantics=("parallel",),
          vmem_limit_bytes=vmem_limit),
      cost_estimate=pl.CostEstimate(
          flops=flops, transcendentals=transcendentals,
          bytes_accessed=bytes_accessed),
  )(x_flat, eps.astype(_F32), *params)

  # Already joint-interleaved: Xout.view(-1, 1, J, 9) is a free reshape.
  pose = pose_flat.reshape(N, 1, J, 9)
  return {"pose": pose, "mean": meanstd[:, :L], "std": meanstd[:, L:]}


# ----------------------------------------------------------------------------
# Synthetic parameters (PyTorch layout) + pure-JAX reference for validation
# ----------------------------------------------------------------------------
def init_raw_vposer_params(key, n_features, num_neurons, latentD, num_joints):
  keys = jax.random.split(key, 9)

  def linear(k, fin, fout):
    kw, kb = jax.random.split(k)
    w = jax.random.normal(kw, (fout, fin), _F32) / jnp.sqrt(jnp.float32(fin))
    b = 0.01 * jax.random.normal(kb, (fout,), _F32)
    return w, b

  def batchnorm(k, dim):
    kg, kb, km, kv = jax.random.split(k, 4)
    gamma = 1.0 + 0.1 * jax.random.normal(kg, (dim,), _F32)
    beta = 0.1 * jax.random.normal(kb, (dim,), _F32)
    rmean = 0.1 * jax.random.normal(km, (dim,), _F32)
    rvar = 1.0 + 0.1 * jnp.abs(jax.random.normal(kv, (dim,), _F32))
    return (gamma, beta, rmean, rvar)

  raw = {}
  raw["bn1"] = batchnorm(keys[0], n_features)
  raw["fc1_w"], raw["fc1_b"] = linear(keys[1], n_features, num_neurons)
  raw["bn2"] = batchnorm(keys[2], num_neurons)
  raw["fc2_w"], raw["fc2_b"] = linear(keys[3], num_neurons, num_neurons)
  raw["mu_w"], raw["mu_b"] = linear(keys[4], num_neurons, latentD)
  raw["lv_w"], raw["lv_b"] = linear(keys[5], num_neurons, latentD)
  raw["d1_w"], raw["d1_b"] = linear(keys[6], latentD, num_neurons)
  raw["d2_w"], raw["d2_b"] = linear(keys[7], num_neurons, num_neurons)
  raw["do_w"], raw["do_b"] = linear(keys[8], num_neurons, num_joints * 6)
  return raw


def vposer_reference(Pin, eps, raw, *, num_joints):
  N = Pin.shape[0]
  x = Pin.reshape(N, -1).astype(_F32)

  def bn(v, p):
    gamma, beta, rmean, rvar = p
    return (v - rmean) / jnp.sqrt(rvar + 1e-5) * gamma + beta

  def lin(v, w, b):
    return v @ w.T + b

  def lrelu(v):
    return jnp.where(v >= 0, v, 0.2 * v)

  h = lrelu(lin(bn(x, raw["bn1"]), raw["fc1_w"], raw["fc1_b"]))
  h = lrelu(lin(bn(h, raw["bn2"]), raw["fc2_w"], raw["fc2_b"]))
  mu = lin(h, raw["mu_w"], raw["mu_b"])
  std = jax.nn.softplus(lin(h, raw["lv_w"], raw["lv_b"]))
  z = mu + eps * std
  d = lrelu(lin(z, raw["d1_w"], raw["d1_b"]))
  d = lrelu(lin(d, raw["d2_w"], raw["d2_b"]))
  x6 = lin(d, raw["do_w"], raw["do_b"]).reshape(-1, 3, 2)
  col0, col1 = x6[..., 0], x6[..., 1]
  b1 = col0 / jnp.maximum(jnp.linalg.norm(col0, axis=1, keepdims=True), 1e-12)
  dp = jnp.sum(b1 * col1, axis=1, keepdims=True)
  w = col1 - dp * b1
  b2 = w / jnp.maximum(jnp.linalg.norm(w, axis=1, keepdims=True), 1e-12)
  b3 = jnp.cross(b1, b2)
  rot = jnp.stack([b1, b2, b3], axis=-1)               # (N*J, 3, 3)
  pose = rot.reshape(N, 1, num_joints, 9)
  return pose, mu, std


if __name__ == "__main__":
  # Small shapes consistent with VPoser(data_shape=[1, 21, 3]).
  N = 16
  num_joints = 21
  n_features = 1 * num_joints * 3                      # 63
  num_neurons = 64
  latentD = 16

  key = jax.random.PRNGKey(0)
  k_in, k_eps, k_par = jax.random.split(key, 3)

  Pin = jax.random.normal(k_in, (N, 1, num_joints, 3), _F32)
  eps = jax.random.normal(k_eps, (N, latentD), _F32)   # rsample noise
  raw = init_raw_vposer_params(k_par, n_features, num_neurons, latentD,
                               num_joints)
  params = prepare_vposer_params(raw, compute_dtype=jnp.bfloat16)

  # With N=16 the tile logic picks tile=8 -> grid=(2,), exercising the
  # multi-step (megacore-shardable) path.
  out = vposer_forward(Pin, eps, params, num_joints=num_joints,
                       latentD=latentD)
  jax.block_until_ready(out)

  assert out["pose"].shape == (N, 1, num_joints, 9)
  assert out["mean"].shape == (N, latentD)
  assert out["std"].shape == (N, latentD)
  assert bool(jnp.all(jnp.isfinite(out["pose"])))

  # Validate against a pure-JAX eval-mode reference (loose tol: bf16 matmuls).
  ref_pose, ref_mu, ref_std = vposer_reference(Pin, eps, raw,
                                               num_joints=num_joints)
  assert float(jnp.max(jnp.abs(out["mean"] - ref_mu))) < 1e-1
  assert float(jnp.max(jnp.abs(out["std"] - ref_std))) < 1e-1
  assert float(jnp.mean(jnp.abs(out["pose"] - ref_pose))) < 5e-2

  # Decoded rotations must be orthonormal (R columns = Gram-Schmidt basis).
  R = out["pose"].reshape(-1, 3, 3)
  eye_err = jnp.max(jnp.abs(jnp.einsum("bij,bkj->bik", R, R) - jnp.eye(3)))
  assert float(eye_err) < 1e-2

  print("KERNEL_OK")
</pallas_src>

<mosaic_0001>
module attributes {stable_mosaic.version = 11 : i64} {
  func.func @_vposer_fused_kernel(%arg0: i32, %arg1: memref<8x63xbf16, #tpu.memory_space<vmem>>, %arg2: memref<8x16xf32, #tpu.memory_space<vmem>>, %arg3: memref<63x64xbf16, #tpu.memory_space<vmem>>, %arg4: memref<1x64xf32, #tpu.memory_space<vmem>>, %arg5: memref<64x64xbf16, #tpu.memory_space<vmem>>, %arg6: memref<1x64xf32, #tpu.memory_space<vmem>>, %arg7: memref<64x144xbf16, #tpu.memory_space<vmem>>, %arg8: memref<1x144xf32, #tpu.memory_space<vmem>>, %arg9: memref<16x64xbf16, #tpu.memory_space<vmem>>, %arg10: memref<1x64xf32, #tpu.memory_space<vmem>>, %arg11: memref<64x64xbf16, #tpu.memory_space<vmem>>, %arg12: memref<1x64xf32, #tpu.memory_space<vmem>>, %arg13: memref<64x126xf32, #tpu.memory_space<vmem>>, %arg14: memref<1x126xf32, #tpu.memory_space<vmem>>, %arg15: memref<189x189xf32, #tpu.memory_space<vmem>>, %arg16: memref<8x189xf32, #tpu.memory_space<vmem>>, %arg17: memref<8x32xf32, #tpu.memory_space<vmem>>) attributes {dimension_semantics = [#tpu.dimension_semantics<parallel>], iteration_bounds = array<i64: 2>, scalar_prefetch = 0 : i64, scratch_operands = 0 : i64, tpu.core_type = #tpu.core_type<tc>, window_params = [{transform_indices = @transform_0, window_bounds = array<i64: 8, 63>}, {transform_indices = @transform_1, window_bounds = array<i64: 8, 16>}, {pipeline_mode = #tpu.pipeline_mode<synchronous>, transform_indices = @transform_2, window_bounds = array<i64: 63, 64>}, {pipeline_mode = #tpu.pipeline_mode<synchronous>, transform_indices = @transform_3, window_bounds = array<i64: 1, 64>}, {pipeline_mode = #tpu.pipeline_mode<synchronous>, transform_indices = @transform_4, window_bounds = array<i64: 64, 64>}, {pipeline_mode = #tpu.pipeline_mode<synchronous>, transform_indices = @transform_5, window_bounds = array<i64: 1, 64>}, {pipeline_mode = #tpu.pipeline_mode<synchronous>, transform_indices = @transform_6, window_bounds = array<i64: 64, 144>}, {pipeline_mode = #tpu.pipeline_mode<synchronous>, transform_indices = @transform_7, window_bounds = array<i64: 1, 144>}, {pipeline_mode = #tpu.pipeline_mode<synchronous>, transform_indices = @transform_8, window_bounds = array<i64: 16, 64>}, {pipeline_mode = #tpu.pipeline_mode<synchronous>, transform_indices = @transform_9, window_bounds = array<i64: 1, 64>}, {pipeline_mode = #tpu.pipeline_mode<synchronous>, transform_indices = @transform_10, window_bounds = array<i64: 64, 64>}, {pipeline_mode = #tpu.pipeline_mode<synchronous>, transform_indices = @transform_11, window_bounds = array<i64: 1, 64>}, {pipeline_mode = #tpu.pipeline_mode<synchronous>, transform_indices = @transform_12, window_bounds = array<i64: 64, 126>}, {pipeline_mode = #tpu.pipeline_mode<synchronous>, transform_indices = @transform_13, window_bounds = array<i64: 1, 126>}, {pipeline_mode = #tpu.pipeline_mode<synchronous>, transform_indices = @transform_14, window_bounds = array<i64: 189, 189>}, {transform_indices = @transform_15, window_bounds = array<i64: 8, 189>}, {transform_indices = @transform_16, window_bounds = array<i64: 8, 32>}]} {
    %c0 = arith.constant 0 : index
    %c0_0 = arith.constant 0 : index
    %0 = vector.load %arg1[%c0, %c0_0] : memref<8x63xbf16, #tpu.memory_space<vmem>>, vector<8x63xbf16>
    %c0_1 = arith.constant 0 : index
    %c0_2 = arith.constant 0 : index
    %1 = vector.load %arg3[%c0_1, %c0_2] : memref<63x64xbf16, #tpu.memory_space<vmem>>, vector<63x64xbf16>
    %cst = arith.constant dense<0.000000e+00> : vector<8x64xf32>
    %2 = tpu.matmul %0, %1, %cst {dimension_numbers = #tpu.dot_dimension_numbers<[1], [0], [0], [1], [0, 0, 1, 1], [], []>} : vector<8x63xbf16>, vector<63x64xbf16>, vector<8x64xf32> -> vector<8x64xf32>
    %c0_3 = arith.constant 0 : index
    %c0_4 = arith.constant 0 : index
    %3 = vector.load %arg4[%c0_3, %c0_4] : memref<1x64xf32, #tpu.memory_space<vmem>>, vector<1x64xf32>
    %4 = vector.broadcast %3 : vector<1x64xf32> to vector<8x64xf32>
    %5 = arith.addf %2, %4 : vector<8x64xf32>
    %cst_5 = arith.constant 2.000000e-01 : f32
    %6 = vector.broadcast %cst_5 : f32 to vector<8x64xf32>
    %7 = arith.mulf %6, %5 : vector<8x64xf32>
    %8 = arith.maximumf %5, %7 : vector<8x64xf32>
    %9 = arith.truncf %8 : vector<8x64xf32> to vector<8x64xbf16>
    %c0_6 = arith.constant 0 : index
    %c0_7 = arith.constant 0 : index
    %10 = vector.load %arg5[%c0_6, %c0_7] : memref<64x64xbf16, #tpu.memory_space<vmem>>, vector<64x64xbf16>
    %cst_8 = arith.constant dense<0.000000e+00> : vector<8x64xf32>
    %11 = tpu.matmul %9, %10, %cst_8 {dimension_numbers = #tpu.dot_dimension_numbers<[1], [0], [0], [1], [0, 0, 1, 1], [], []>} : vector<8x64xbf16>, vector<64x64xbf16>, vector<8x64xf32> -> vector<8x64xf32>
    %c0_9 = arith.constant 0 : index
    %c0_10 = arith.constant 0 : index
    %12 = vector.load %arg6[%c0_9, %c0_10] : memref<1x64xf32, #tpu.memory_space<vmem>>, vector<1x64xf32>
    %13 = vector.broadcast %12 : vector<1x64xf32> to vector<8x64xf32>
    %14 = arith.addf %11, %13 : vector<8x64xf32>
    %cst_11 = arith.constant 2.000000e-01 : f32
    %15 = vector.broadcast %cst_11 : f32 to vector<8x64xf32>
    %16 = arith.mulf %15, %14 : vector<8x64xf32>
    %17 = arith.maximumf %14, %16 : vector<8x64xf32>
    %18 = arith.truncf %17 : vector<8x64xf32> to vector<8x64xbf16>
    %c0_12 = arith.constant 0 : index
    %c0_13 = arith.constant 0 : index
    %19 = vector.load %arg7[%c0_12, %c0_13] : memref<64x144xbf16, #tpu.memory_space<vmem>>, vector<64x144xbf16>
    %cst_14 = arith.constant dense<0.000000e+00> : vector<8x144xf32>
    %20 = tpu.matmul %18, %19, %cst_14 {dimension_numbers = #tpu.dot_dimension_numbers<[1], [0], [0], [1], [0, 0, 1, 1], [], []>} : vector<8x64xbf16>, vector<64x144xbf16>, vector<8x144xf32> -> vector<8x144xf32>
    %c0_15 = arith.constant 0 : index
    %c0_16 = arith.constant 0 : index
    %21 = vector.load %arg8[%c0_15, %c0_16] : memref<1x144xf32, #tpu.memory_space<vmem>>, vector<1x144xf32>
    %22 = vector.broadcast %21 : vector<1x144xf32> to vector<8x144xf32>
    %23 = arith.addf %20, %22 : vector<8x144xf32>
    %24 = vector.extract_strided_slice %23 {offsets = [0, 0], sizes = [8, 16], strides = [1, 1]} : vector<8x144xf32> to vector<8x16xf32>
    %25 = vector.extract_strided_slice %23 {offsets = [0, 128], sizes = [8, 16], strides = [1, 1]} : vector<8x144xf32> to vector<8x16xf32>
    %cst_17 = arith.constant 0.000000e+00 : f32
    %26 = vector.broadcast %cst_17 : f32 to vector<8x16xf32>
    %27 = arith.maximumf %25, %26 : vector<8x16xf32>
    %28 = math.absf %25 : vector<8x16xf32>
    %cst_18 = arith.constant 0.000000e+00 : f32
    %29 = vector.broadcast %cst_18 : f32 to vector<8x16xf32>
    %30 = arith.subf %29, %28 : vector<8x16xf32>
    %31 = math.exp %30 : vector<8x16xf32>
    %32 = math.log1p %31 : vector<8x16xf32>
    %33 = arith.addf %27, %32 : vector<8x16xf32>
    %c0_19 = arith.constant 0 : index
    %c0_20 = arith.constant 0 : index
    %34 = vector.load %arg2[%c0_19, %c0_20] : memref<8x16xf32, #tpu.memory_space<vmem>>, vector<8x16xf32>
    %35 = arith.mulf %34, %33 : vector<8x16xf32>
    %36 = arith.addf %24, %35 : vector<8x16xf32>
    %37 = arith.truncf %36 : vector<8x16xf32> to vector<8x16xbf16>
    %c0_21 = arith.constant 0 : index
    %c0_22 = arith.constant 0 : index
    %38 = vector.load %arg9[%c0_21, %c0_22] : memref<16x64xbf16, #tpu.memory_space<vmem>>, vector<16x64xbf16>
    %cst_23 = arith.constant dense<0.000000e+00> : vector<8x64xf32>
    %39 = tpu.matmul %37, %38, %cst_23 {dimension_numbers = #tpu.dot_dimension_numbers<[1], [0], [0], [1], [0, 0, 1, 1], [], []>} : vector<8x16xbf16>, vector<16x64xbf16>, vector<8x64xf32> -> vector<8x64xf32>
    %c0_24 = arith.constant 0 : index
    %c0_25 = arith.constant 0 : index
    %40 = vector.load %arg10[%c0_24, %c0_25] : memref<1x64xf32, #tpu.memory_space<vmem>>, vector<1x64xf32>
    %41 = vector.broadcast %40 : vector<1x64xf32> to vector<8x64xf32>
    %42 = arith.addf %39, %41 : vector<8x64xf32>
    %cst_26 = arith.constant 2.000000e-01 : f32
    %43 = vector.broadcast %cst_26 : f32 to vector<8x64xf32>
    %44 = arith.mulf %43, %42 : vector<8x64xf32>
    %45 = arith.maximumf %42, %44 : vector<8x64xf32>
    %46 = arith.truncf %45 : vector<8x64xf32> to vector<8x64xbf16>
    %c0_27 = arith.constant 0 : index
    %c0_28 = arith.constant 0 : index
    %47 = vector.load %arg11[%c0_27, %c0_28] : memref<64x64xbf16, #tpu.memory_space<vmem>>, vector<64x64xbf16>
    %cst_29 = arith.constant dense<0.000000e+00> : vector<8x64xf32>
    %48 = tpu.matmul %46, %47, %cst_29 {dimension_numbers = #tpu.dot_dimension_numbers<[1], [0], [0], [1], [0, 0, 1, 1], [], []>} : vector<8x64xbf16>, vector<64x64xbf16>, vector<8x64xf32> -> vector<8x64xf32>
    %c0_30 = arith.constant 0 : index
    %c0_31 = arith.constant 0 : index
    %49 = vector.load %arg12[%c0_30, %c0_31] : memref<1x64xf32, #tpu.memory_space<vmem>>, vector<1x64xf32>
    %50 = vector.broadcast %49 : vector<1x64xf32> to vector<8x64xf32>
    %51 = arith.addf %48, %50 : vector<8x64xf32>
    %cst_32 = arith.constant 2.000000e-01 : f32
    %52 = vector.broadcast %cst_32 : f32 to vector<8x64xf32>
    %53 = arith.mulf %52, %51 : vector<8x64xf32>
    %54 = arith.maximumf %51, %53 : vector<8x64xf32>
    %c0_33 = arith.constant 0 : index
    %c0_34 = arith.constant 0 : index
    %55 = vector.load %arg13[%c0_33, %c0_34] : memref<64x126xf32, #tpu.memory_space<vmem>>, vector<64x126xf32>
    %cst_35 = arith.constant dense<0.000000e+00> : vector<8x126xf32>
    %56 = tpu.matmul %54, %55, %cst_35 {dimension_numbers = #tpu.dot_dimension_numbers<[1], [0], [0], [1], [0, 0, 1, 1], [], []>} : vector<8x64xf32>, vector<64x126xf32>, vector<8x126xf32> -> vector<8x126xf32>
    %c0_36 = arith.constant 0 : index
    %c0_37 = arith.constant 0 : index
    %57 = vector.load %arg14[%c0_36, %c0_37] : memref<1x126xf32, #tpu.memory_space<vmem>>, vector<1x126xf32>
    %58 = vector.broadcast %57 : vector<1x126xf32> to vector<8x126xf32>
    %59 = arith.addf %56, %58 : vector<8x126xf32>
    %60 = vector.extract_strided_slice %59 {offsets = [0, 0], sizes = [8, 21], strides = [1, 1]} : vector<8x126xf32> to vector<8x21xf32>
    %61 = vector.extract_strided_slice %59 {offsets = [0, 21], sizes = [8, 21], strides = [1, 1]} : vector<8x126xf32> to vector<8x21xf32>
    %62 = vector.extract_strided_slice %59 {offsets = [0, 42], sizes = [8, 21], strides = [1, 1]} : vector<8x126xf32> to vector<8x21xf32>
    %63 = vector.extract_strided_slice %59 {offsets = [0, 63], sizes = [8, 21], strides = [1, 1]} : vector<8x126xf32> to vector<8x21xf32>
    %64 = vector.extract_strided_slice %59 {offsets = [0, 84], sizes = [8, 21], strides = [1, 1]} : vector<8x126xf32> to vector<8x21xf32>
    %65 = vector.extract_strided_slice %59 {offsets = [0, 105], sizes = [8, 21], strides = [1, 1]} : vector<8x126xf32> to vector<8x21xf32>
    %66 = arith.mulf %60, %60 : vector<8x21xf32>
    %67 = arith.mulf %62, %62 : vector<8x21xf32>
    %68 = arith.addf %66, %67 : vector<8x21xf32>
    %69 = arith.mulf %64, %64 : vector<8x21xf32>
    %70 = arith.addf %68, %69 : vector<8x21xf32>
    %cst_38 = arith.constant 1.000000e-24 : f32
    %71 = vector.broadcast %cst_38 : f32 to vector<8x21xf32>
    %72 = arith.maximumf %70, %71 : vector<8x21xf32>
    %73 = math.rsqrt %72 : vector<8x21xf32>
    %74 = arith.mulf %60, %73 : vector<8x21xf32>
    %75 = arith.mulf %62, %73 : vector<8x21xf32>
    %76 = arith.mulf %64, %73 : vector<8x21xf32>
    %77 = arith.mulf %74, %61 : vector<8x21xf32>
    %78 = arith.mulf %75, %63 : vector<8x21xf32>
    %79 = arith.addf %77, %78 : vector<8x21xf32>
    %80 = arith.mulf %76, %65 : vector<8x21xf32>
    %81 = arith.addf %79, %80 : vector<8x21xf32>
    %82 = arith.mulf %81, %74 : vector<8x21xf32>
    %83 = arith.subf %61, %82 : vector<8x21xf32>
    %84 = arith.mulf %81, %75 : vector<8x21xf32>
    %85 = arith.subf %63, %84 : vector<8x21xf32>
    %86 = arith.mulf %81, %76 : vector<8x21xf32>
    %87 = arith.subf %65, %86 : vector<8x21xf32>
    %88 = arith.mulf %83, %83 : vector<8x21xf32>
    %89 = arith.mulf %85, %85 : vector<8x21xf32>
    %90 = arith.addf %88, %89 : vector<8x21xf32>
    %91 = arith.mulf %87, %87 : vector<8x21xf32>
    %92 = arith.addf %90, %91 : vector<8x21xf32>
    %cst_39 = arith.constant 1.000000e-24 : f32
    %93 = vector.broadcast %cst_39 : f32 to vector<8x21xf32>
    %94 = arith.maximumf %92, %93 : vector<8x21xf32>
    %95 = math.rsqrt %94 : vector<8x21xf32>
    %96 = arith.mulf %83, %95 : vector<8x21xf32>
    %97 = arith.mulf %85, %95 : vector<8x21xf32>
    %98 = arith.mulf %87, %95 : vector<8x21xf32>
    %99 = arith.mulf %75, %98 : vector<8x21xf32>
    %100 = arith.mulf %76, %97 : vector<8x21xf32>
    %101 = arith.subf %99, %100 : vector<8x21xf32>
    %102 = arith.mulf %76, %96 : vector<8x21xf32>
    %103 = arith.mulf %74, %98 : vector<8x21xf32>
    %104 = arith.subf %102, %103 : vector<8x21xf32>
    %105 = arith.mulf %74, %97 : vector<8x21xf32>
    %106 = arith.mulf %75, %96 : vector<8x21xf32>
    %107 = arith.subf %105, %106 : vector<8x21xf32>
    %108 = tpu.concatenate %74, %96, %101, %75, %97, %104, %76, %98, %107 in 1 : vector<8x21xf32>, vector<8x21xf32>, vector<8x21xf32>, vector<8x21xf32>, vector<8x21xf32>, vector<8x21xf32>, vector<8x21xf32>, vector<8x21xf32>, vector<8x21xf32> -> vector<8x189xf32>
    %c0_40 = arith.constant 0 : index
    %c0_41 = arith.constant 0 : index
    %109 = vector.load %arg15[%c0_40, %c0_41] : memref<189x189xf32, #tpu.memory_space<vmem>>, vector<189x189xf32>
    %cst_42 = arith.constant dense<0.000000e+00> : vector<8x189xf32>
    %110 = tpu.matmul %108, %109, %cst_42 {dimension_numbers = #tpu.dot_dimension_numbers<[1], [0], [0], [1], [0, 0, 1, 1], [], []>} : vector<8x189xf32>, vector<189x189xf32>, vector<8x189xf32> -> vector<8x189xf32>
    %c0_43 = arith.constant 0 : index
    %c0_44 = arith.constant 0 : index
    %111 = vector.load %arg16[%c0_43, %c0_44] : memref<8x189xf32, #tpu.memory_space<vmem>>, vector<8x189xf32>
    tpu.vector_store %arg16[%c0_43, %c0_44], %110 {strides = array<i32>} : memref<8x189xf32, #tpu.memory_space<vmem>>, vector<8x189xf32>,
    %112 = tpu.concatenate %24, %33 in 1 : vector<8x16xf32>, vector<8x16xf32> -> vector<8x32xf32>
    %c0_45 = arith.constant 0 : index
    %c0_46 = arith.constant 0 : index
    %113 = vector.load %arg17[%c0_45, %c0_46] : memref<8x32xf32, #tpu.memory_space<vmem>>, vector<8x32xf32>
    tpu.vector_store %arg17[%c0_45, %c0_46], %112 {strides = array<i32>} : memref<8x32xf32, #tpu.memory_space<vmem>>, vector<8x32xf32>,
    return
  }
  func.func @transform_0(%arg0: i32) -> (i32, i32) {
    %c0_i32 = arith.constant 0 : i32
    %c0_i32_0 = arith.constant 0 : i32
    return %arg0, %c0_i32 : i32, i32
  }
  func.func @transform_1(%arg0: i32) -> (i32, i32) {
    %c0_i32 = arith.constant 0 : i32
    %c0_i32_0 = arith.constant 0 : i32
    return %arg0, %c0_i32 : i32, i32
  }
  func.func @transform_2(%arg0: i32) -> (i32, i32) {
    %c0_i32 = arith.constant 0 : i32
    %c0_i32_0 = arith.constant 0 : i32
    %c0_i32_1 = arith.constant 0 : i32
    return %c0_i32, %c0_i32_0 : i32, i32
  }
  func.func @transform_3(%arg0: i32) -> (i32, i32) {
    %c0_i32 = arith.constant 0 : i32
    %c0_i32_0 = arith.constant 0 : i32
    %c0_i32_1 = arith.constant 0 : i32
    return %c0_i32, %c0_i32_0 : i32, i32
  }
  func.func @transform_4(%arg0: i32) -> (i32, i32) {
    %c0_i32 = arith.constant 0 : i32
    %c0_i32_0 = arith.constant 0 : i32
    %c0_i32_1 = arith.constant 0 : i32
    return %c0_i32, %c0_i32_0 : i32, i32
  }
  func.func @transform_5(%arg0: i32) -> (i32, i32) {
    %c0_i32 = arith.constant 0 : i32
    %c0_i32_0 = arith.constant 0 : i32
    %c0_i32_1 = arith.constant 0 : i32
    return %c0_i32, %c0_i32_0 : i32, i32
  }
  func.func @transform_6(%arg0: i32) -> (i32, i32) {
    %c0_i32 = arith.constant 0 : i32
    %c0_i32_0 = arith.constant 0 : i32
    %c0_i32_1 = arith.constant 0 : i32
    return %c0_i32, %c0_i32_0 : i32, i32
  }
  func.func @transform_7(%arg0: i32) -> (i32, i32) {
    %c0_i32 = arith.constant 0 : i32
    %c0_i32_0 = arith.constant 0 : i32
    %c0_i32_1 = arith.constant 0 : i32
    return %c0_i32, %c0_i32_0 : i32, i32
  }
  func.func @transform_8(%arg0: i32) -> (i32, i32) {
    %c0_i32 = arith.constant 0 : i32
    %c0_i32_0 = arith.constant 0 : i32
    %c0_i32_1 = arith.constant 0 : i32
    return %c0_i32, %c0_i32_0 : i32, i32
  }
  func.func @transform_9(%arg0: i32) -> (i32, i32) {
    %c0_i32 = arith.constant 0 : i32
    %c0_i32_0 = arith.constant 0 : i32
    %c0_i32_1 = arith.constant 0 : i32
    return %c0_i32, %c0_i32_0 : i32, i32
  }
  func.func @transform_10(%arg0: i32) -> (i32, i32) {
    %c0_i32 = arith.constant 0 : i32
    %c0_i32_0 = arith.constant 0 : i32
    %c0_i32_1 = arith.constant 0 : i32
    return %c0_i32, %c0_i32_0 : i32, i32
  }
  func.func @transform_11(%arg0: i32) -> (i32, i32) {
    %c0_i32 = arith.constant 0 : i32
    %c0_i32_0 = arith.constant 0 : i32
    %c0_i32_1 = arith.constant 0 : i32
    return %c0_i32, %c0_i32_0 : i32, i32
  }
  func.func @transform_12(%arg0: i32) -> (i32, i32) {
    %c0_i32 = arith.constant 0 : i32
    %c0_i32_0 = arith.constant 0 : i32
    %c0_i32_1 = arith.constant 0 : i32
    return %c0_i32, %c0_i32_0 : i32, i32
  }
  func.func @transform_13(%arg0: i32) -> (i32, i32) {
    %c0_i32 = arith.constant 0 : i32
    %c0_i32_0 = arith.constant 0 : i32
    %c0_i32_1 = arith.constant 0 : i32
    return %c0_i32, %c0_i32_0 : i32, i32
  }
  func.func @transform_14(%arg0: i32) -> (i32, i32) {
    %c0_i32 = arith.constant 0 : i32
    %c0_i32_0 = arith.constant 0 : i32
    %c0_i32_1 = arith.constant 0 : i32
    return %c0_i32, %c0_i32_0 : i32, i32
  }
  func.func @transform_15(%arg0: i32) -> (i32, i32) {
    %c0_i32 = arith.constant 0 : i32
    %c0_i32_0 = arith.constant 0 : i32
    return %arg0, %c0_i32 : i32, i32
  }
  func.func @transform_16(%arg0: i32) -> (i32, i32) {
    %c0_i32 = arith.constant 0 : i32
    %c0_i32_0 = arith.constant 0 : i32
    return %arg0, %c0_i32 : i32, i32
  }
}

</mosaic_0001>

<llo_original>
// kernel: vposer_forward.1
$region0: #{vposer_forward.1}
  #allocation0 [shape = 'u32[]', space=smem, size = 0x4, offset = 0x4, fixed_abs, tag = 'smem constant byte address 0x4 - core index']
  #allocation1 [shape = 'u32[144,128]{1,0:T(1,128)}', space=vmem, size = 0x12000, scoped, tag = 'internal scratch']
  %s0 = inlined_call_operand.vmem [shape: bf16[16,63], index: 0, kind: input, shape index: {}]
  %s1 = inlined_call_operand.vmem [shape: f32[16,16], index: 1, kind: input, shape index: {}]
  %s2 = inlined_call_operand.vmem [shape: bf16[63,64], index: 2, kind: input, shape index: {}]
  %s3 = inlined_call_operand.vmem [shape: f32[1,64], index: 3, kind: input, shape index: {}]
  %s4 = inlined_call_operand.vmem [shape: bf16[64,64], index: 4, kind: input, shape index: {}]
  %s5 = inlined_call_operand.vmem [shape: f32[1,64], index: 5, kind: input, shape index: {}]
  %s6 = inlined_call_operand.vmem [shape: bf16[64,144], index: 6, kind: input, shape index: {}]
  %s7 = inlined_call_operand.vmem [shape: f32[1,144], index: 7, kind: input, shape index: {}]
  %s8 = inlined_call_operand.vmem [shape: bf16[16,64], index: 8, kind: input, shape index: {}]
  %s9 = inlined_call_operand.vmem [shape: f32[1,64], index: 9, kind: input, shape index: {}]
  %s10 = inlined_call_operand.vmem [shape: bf16[64,64], index: 10, kind: input, shape index: {}]
  %s11 = inlined_call_operand.vmem [shape: f32[1,64], index: 11, kind: input, shape index: {}]
  %s12 = inlined_call_operand.vmem [shape: f32[64,126], index: 12, kind: input, shape index: {}]
  %s13 = inlined_call_operand.vmem [shape: f32[1,126], index: 13, kind: input, shape index: {}]
  %s14 = inlined_call_operand.hbm [shape: f32[189,189], index: 14, kind: input, shape index: {}]
  %s15 = inlined_call_operand.vmem [shape: f32[16,189], index: 15, kind: output, shape index: {0}]
  %s16 = inlined_call_operand.vmem [shape: f32[16,32], index: 16, kind: output, shape index: {1}]
  %17 = xla_tuple %s15, %s16
  %s18 = sld [smem:[#allocation0]]
  $region105: #{vposer_forward.1} parent=0
    _
  %s20 = ssub.s32 1, %s18
  %s21 = scalar_select 0, %s20, %s18
  $region1: #{vposer_forward.1} parent=0
    #allocation2 [shape = 'u8[196608]{0}', space=vmem, size = 0x30000, scoped, tag = 'input window, operand 14, single buffered']
    #allocation3 [shape = 's32[2]{0}', space=sflag, size = 0x8, scoped, tag = 'scoped memory for vposer_forward.1']
    %22 = vsyncpa [#allocation3], 0
    loop: start=0, step=1, limit=4
    $region2: #{vposer_forward.1} parent=1 // loop_pre_header
      _
    $region3: #{vposer_forward.1} parent=1 // loop_header
      %s24 = sphi 0, %s28
      %p25 = scmp.ge.s32.totalorder %s24, 4
      %s34 = sphi 0, %s36
      %s37 = sphi 0, %s34
      %s38 = sphi 0, %s37
      %s54 = sphi 0, %s38
      %s60 = sphi 0, %s62
      %s63 = sphi 0, %s60
      %s64 = sphi 0, %s63
      %s80 = sphi 0, %s64
      %s84 = sphi 0, %s84
      %s86 = sphi 0, %s84
      %s87 = sphi 0, %s86
      %s101 = sphi 0, %s87
      %s105 = sphi 0, %s105
      %s107 = sphi 0, %s105
      %s108 = sphi 0, %s107
      %s122 = sphi 0, %s108
      %s126 = sphi 0, %s126
      %s128 = sphi 0, %s126
      %s129 = sphi 0, %s128
      %s143 = sphi 0, %s129
      %s147 = sphi 0, %s147
      %s149 = sphi 0, %s147
      %s150 = sphi 0, %s149
      %s164 = sphi 0, %s150
      %s168 = sphi 0, %s168
      %s170 = sphi 0, %s168
      %s171 = sphi 0, %s170
      %s185 = sphi 0, %s171
      %s189 = sphi 0, %s189
      %s191 = sphi 0, %s189
      %s192 = sphi 0, %s191
      %s206 = sphi 0, %s192
      %s210 = sphi 0, %s210
      %s212 = sphi 0, %s210
      %s213 = sphi 0, %s212
      %s227 = sphi 0, %s213
      %s231 = sphi 0, %s231
      %s233 = sphi 0, %s231
      %s234 = sphi 0, %s233
      %s248 = sphi 0, %s234
      %s252 = sphi 0, %s252
      %s254 = sphi 0, %s252
      %s255 = sphi 0, %s254
      %s269 = sphi 0, %s255
      %s273 = sphi 0, %s273
      %s275 = sphi 0, %s273
      %s276 = sphi 0, %s275
      %s290 = sphi 0, %s276
      %s294 = sphi 0, %s294
      %s296 = sphi 0, %s294
      %s297 = sphi 0, %s296
      %s311 = sphi 0, %s297
      %s315 = sphi 0, %s315
      %s317 = sphi 0, %s315
      %s318 = sphi 0, %s317
      %s332 = sphi 0, %s318
      %s336 = sphi 0, %s336
      %s338 = sphi 0, %s336
      %s339 = sphi 0, %s338
      %s353 = sphi 0, %s339
      %s359 = sphi 0, %s361
      %s362 = sphi 0, %s359
      %s363 = sphi 0, %s362
      %s379 = sphi 0, %s363
      %s385 = sphi 0, %s387
      %s388 = sphi 0, %s385
      %s389 = sphi 0, %s388
      %s405 = sphi 0, %s389
    $region4: #{vposer_forward.1} parent=1 // loop_header_branch
      %27 = sbr.rel (%p25) target = $region8
    $region5: #{vposer_forward.1} parent=1 // loop_body
      %s29 = ssub.s32 %s24, 1
      %s30 = ssub.s32 %s24, 2
      %s31 = sadd.s32 %s24, 1
      %s32 = ssub.s32 %s24, %s31
      %p33 = scmp.eq.s32.totalorder %s32, 0
      %s35 = sadd.s32 %s34, 1
      %s36 = scalar_select %p33, %s34, %s35
      %p39 = pneg %p33
      %p40 = scmp.eq.s32.totalorder %s24, 1
      %p41 = por %p39, %p40
      %p42 = scmp.ne.s32.totalorder %s34, %s37
      %p43 = scmp.eq.s32.totalorder %s24, 0
      %p44 = por %p42, %p43
      %p45 = scmp.ne.s32.totalorder %s34, %s37
      %p46 = scmp.eq.s32.totalorder %s29, 1
      %p47 = por %p45, %p46
      %p48 = scmp.ne.s32.totalorder %s37, %s38
      %p49 = scmp.eq.s32.totalorder %s29, 0
      %p50 = por %p48, %p49
      %p51 = scmp.ne.s32.totalorder %s37, %s38
      %p52 = scmp.eq.s32.totalorder %s30, 1
      %p53 = por %p51, %p52
      %p55 = scmp.ne.s32.totalorder %s38, %s54
      %p56 = scmp.eq.s32.totalorder %s30, 0
      %p57 = por %p55, %p56
      %s58 = ssub.s32 %s24, %s31
      %p59 = scmp.eq.s32.totalorder %s58, 0
      %s61 = sadd.s32 %s60, 1
      %s62 = scalar_select %p59, %s60, %s61
      %p65 = pneg %p59
      %p66 = scmp.eq.s32.totalorder %s24, 1
      %p67 = por %p65, %p66
      %p68 = scmp.ne.s32.totalorder %s60, %s63
      %p69 = scmp.eq.s32.totalorder %s24, 0
      %p70 = por %p68, %p69
      %p71 = scmp.ne.s32.totalorder %s60, %s63
      %p72 = scmp.eq.s32.totalorder %s29, 1
      %p73 = por %p71, %p72
      %p74 = scmp.ne.s32.totalorder %s63, %s64
      %p75 = scmp.eq.s32.totalorder %s29, 0
      %p76 = por %p74, %p75
      %p77 = scmp.ne.s32.totalorder %s63, %s64
      %p78 = scmp.eq.s32.totalorder %s30, 1
      %p79 = por %p77, %p78
      %p81 = scmp.ne.s32.totalorder %s64, %s80
      %p82 = scmp.eq.s32.totalorder %s30, 0
      %p83 = por %p81, %p82
      %s85 = sadd.s32 %s84, 1
      %p88 = scmp.eq.s32.totalorder %s24, 1
      %p89 = scmp.ne.s32.totalorder %s84, %s86
      %p90 = scmp.eq.s32.totalorder %s24, 0
      %p91 = por %p89, %p90
      %p92 = scmp.ne.s32.totalorder %s84, %s86
      %p93 = scmp.eq.s32.totalorder %s29, 1
      %p94 = por %p92, %p93
      %p95 = scmp.ne.s32.totalorder %s86, %s87
      %p96 = scmp.eq.s32.totalorder %s29, 0
      %p97 = por %p95, %p96
      %p98 = scmp.ne.s32.totalorder %s86, %s87
      %p99 = scmp.eq.s32.totalorder %s30, 1
      %p100 = por %p98, %p99
      %p102 = scmp.ne.s32.totalorder %s87, %s101
      %p103 = scmp.eq.s32.totalorder %s30, 0
      %p104 = por %p102, %p103
      %s106 = sadd.s32 %s105, 1
      %p109 = scmp.eq.s32.totalorder %s24, 1
      %p110 = scmp.ne.s32.totalorder %s105, %s107
      %p111 = scmp.eq.s32.totalorder %s24, 0
      %p112 = por %p110, %p111
      %p113 = scmp.ne.s32.totalorder %s105, %s107
      %p114 = scmp.eq.s32.totalorder %s29, 1
      %p115 = por %p113, %p114
      %p116 = scmp.ne.s32.totalorder %s107, %s108
      %p117 = scmp.eq.s32.totalorder %s29, 0
      %p118 = por %p116, %p117
      %p119 = scmp.ne.s32.totalorder %s107, %s108
      %p120 = scmp.eq.s32.totalorder %s30, 1
      %p121 = por %p119, %p120
      %p123 = scmp.ne.s32.totalorder %s108, %s122
      %p124 = scmp.eq.s32.totalorder %s30, 0
      %p125 = por %p123, %p124
      %s127 = sadd.s32 %s126, 1
      %p130 = scmp.eq.s32.totalorder %s24, 1
      %p131 = scmp.ne.s32.totalorder %s126, %s128
      %p132 = scmp.eq.s32.totalorder %s24, 0
      %p133 = por %p131, %p132
      %p134 = scmp.ne.s32.totalorder %s126, %s128
      %p135 = scmp.eq.s32.totalorder %s29, 1
      %p136 = por %p134, %p135
      %p137 = scmp.ne.s32.totalorder %s128, %s129
      %p138 = scmp.eq.s32.totalorder %s29, 0
      %p139 = por %p137, %p138
      %p140 = scmp.ne.s32.totalorder %s128, %s129
      %p141 = scmp.eq.s32.totalorder %s30, 1
      %p142 = por %p140, %p141
      %p144 = scmp.ne.s32.totalorder %s129, %s143
      %p145 = scmp.eq.s32.totalorder %s30, 0
      %p146 = por %p144, %p145
      %s148 = sadd.s32 %s147, 1
      %p151 = scmp.eq.s32.totalorder %s24, 1
      %p152 = scmp.ne.s32.totalorder %s147, %s149
      %p153 = scmp.eq.s32.totalorder %s24, 0
      %p154 = por %p152, %p153
      %p155 = scmp.ne.s32.totalorder %s147, %s149
      %p156 = scmp.eq.s32.totalorder %s29, 1
      %p157 = por %p155, %p156
      %p158 = scmp.ne.s32.totalorder %s149, %s150
      %p159 = scmp.eq.s32.totalorder %s29, 0
      %p160 = por %p158, %p159
      %p161 = scmp.ne.s32.totalorder %s149, %s150
      %p162 = scmp.eq.s32.totalorder %s30, 1
      %p163 = por %p161, %p162
      %p165 = scmp.ne.s32.totalorder %s150, %s164
      %p166 = scmp.eq.s32.totalorder %s30, 0
      %p167 = por %p165, %p166
      %s169 = sadd.s32 %s168, 1
      %p172 = scmp.eq.s32.totalorder %s24, 1
      %p173 = scmp.ne.s32.totalorder %s168, %s170
      %p174 = scmp.eq.s32.totalorder %s24, 0
      %p175 = por %p173, %p174
      %p176 = scmp.ne.s32.totalorder %s168, %s170
      %p177 = scmp.eq.s32.totalorder %s29, 1
      %p178 = por %p176, %p177
      %p179 = scmp.ne.s32.totalorder %s170, %s171
      %p180 = scmp.eq.s32.totalorder %s29, 0
      %p181 = por %p179, %p180
      %p182 = scmp.ne.s32.totalorder %s170, %s171
      %p183 = scmp.eq.s32.totalorder %s30, 1
      %p184 = por %p182, %p183
      %p186 = scmp.ne.s32.totalorder %s171, %s185
      %p187 = scmp.eq.s32.totalorder %s30, 0
      %p188 = por %p186, %p187
      %s190 = sadd.s32 %s189, 1
      %p193 = scmp.eq.s32.totalorder %s24, 1
      %p194 = scmp.ne.s32.totalorder %s189, %s191
      %p195 = scmp.eq.s32.totalorder %s24, 0
      %p196 = por %p194, %p195
      %p197 = scmp.ne.s32.totalorder %s189, %s191
      %p198 = scmp.eq.s32.totalorder %s29, 1
      %p199 = por %p197, %p198
      %p200 = scmp.ne.s32.totalorder %s191, %s192
      %p201 = scmp.eq.s32.totalorder %s29, 0
      %p202 = por %p200, %p201
      %p203 = scmp.ne.s32.totalorder %s191, %s192
      %p204 = scmp.eq.s32.totalorder %s30, 1
      %p205 = por %p203, %p204
      %p207 = scmp.ne.s32.totalorder %s192, %s206
      %p208 = scmp.eq.s32.totalorder %s30, 0
      %p209 = por %p207, %p208
      %s211 = sadd.s32 %s210, 1
      %p214 = scmp.eq.s32.totalorder %s24, 1
      %p215 = scmp.ne.s32.totalorder %s210, %s212
      %p216 = scmp.eq.s32.totalorder %s24, 0
      %p217 = por %p215, %p216
      %p218 = scmp.ne.s32.totalorder %s210, %s212
      %p219 = scmp.eq.s32.totalorder %s29, 1
      %p220 = por %p218, %p219
      %p221 = scmp.ne.s32.totalorder %s212, %s213
      %p222 = scmp.eq.s32.totalorder %s29, 0
      %p223 = por %p221, %p222
      %p224 = scmp.ne.s32.totalorder %s212, %s213
      %p225 = scmp.eq.s32.totalorder %s30, 1
      %p226 = por %p224, %p225
      %p228 = scmp.ne.s32.totalorder %s213, %s227
      %p229 = scmp.eq.s32.totalorder %s30, 0
      %p230 = por %p228, %p229
      %s232 = sadd.s32 %s231, 1
      %p235 = scmp.eq.s32.totalorder %s24, 1
      %p236 = scmp.ne.s32.totalorder %s231, %s233
      %p237 = scmp.eq.s32.totalorder %s24, 0
      %p238 = por %p236, %p237
      %p239 = scmp.ne.s32.totalorder %s231, %s233
      %p240 = scmp.eq.s32.totalorder %s29, 1
      %p241 = por %p239, %p240
      %p242 = scmp.ne.s32.totalorder %s233, %s234
      %p243 = scmp.eq.s32.totalorder %s29, 0
      %p244 = por %p242, %p243
      %p245 = scmp.ne.s32.totalorder %s233, %s234
      %p246 = scmp.eq.s32.totalorder %s30, 1
      %p247 = por %p245, %p246
      %p249 = scmp.ne.s32.totalorder %s234, %s248
      %p250 = scmp.eq.s32.totalorder %s30, 0
      %p251 = por %p249, %p250
      %s253 = sadd.s32 %s252, 1
      %p256 = scmp.eq.s32.totalorder %s24, 1
      %p257 = scmp.ne.s32.totalorder %s252, %s254
      %p258 = scmp.eq.s32.totalorder %s24, 0
      %p259 = por %p257, %p258
      %p260 = scmp.ne.s32.totalorder %s252, %s254
      %p261 = scmp.eq.s32.totalorder %s29, 1
      %p262 = por %p260, %p261
      %p263 = scmp.ne.s32.totalorder %s254, %s255
      %p264 = scmp.eq.s32.totalorder %s29, 0
      %p265 = por %p263, %p264
      %p266 = scmp.ne.s32.totalorder %s254, %s255
      %p267 = scmp.eq.s32.totalorder %s30, 1
      %p268 = por %p266, %p267
      %p270 = scmp.ne.s32.totalorder %s255, %s269
      %p271 = scmp.eq.s32.totalorder %s30, 0
      %p272 = por %p270, %p271
      %s274 = sadd.s32 %s273, 1
      %p277 = scmp.eq.s32.totalorder %s24, 1
      %p278 = scmp.ne.s32.totalorder %s273, %s275
      %p279 = scmp.eq.s32.totalorder %s24, 0
      %p280 = por %p278, %p279
      %p281 = scmp.ne.s32.totalorder %s273, %s275
      %p282 = scmp.eq.s32.totalorder %s29, 1
      %p283 = por %p281, %p282
      %p284 = scmp.ne.s32.totalorder %s275, %s276
      %p285 = scmp.eq.s32.totalorder %s29, 0
      %p286 = por %p284, %p285
      %p287 = scmp.ne.s32.totalorder %s275, %s276
      %p288 = scmp.eq.s32.totalorder %s30, 1
      %p289 = por %p287, %p288
      %p291 = scmp.ne.s32.totalorder %s276, %s290
      %p292 = scmp.eq.s32.totalorder %s30, 0
      %p293 = por %p291, %p292
      %s295 = sadd.s32 %s294, 1
      %p298 = scmp.eq.s32.totalorder %s24, 1
      %p299 = scmp.ne.s32.totalorder %s294, %s296
      %p300 = scmp.eq.s32.totalorder %s24, 0
      %p301 = por %p299, %p300
      %p302 = scmp.ne.s32.totalorder %s294, %s296
      %p303 = scmp.eq.s32.totalorder %s29, 1
      %p304 = por %p302, %p303
      %p305 = scmp.ne.s32.totalorder %s296, %s297
      %p306 = scmp.eq.s32.totalorder %s29, 0
      %p307 = por %p305, %p306
      %p308 = scmp.ne.s32.totalorder %s296, %s297
      %p309 = scmp.eq.s32.totalorder %s30, 1
      %p310 = por %p308, %p309
      %p312 = scmp.ne.s32.totalorder %s297, %s311
      %p313 = scmp.eq.s32.totalorder %s30, 0
      %p314 = por %p312, %p313
      %s316 = sadd.s32 %s315, 1
      %p319 = scmp.eq.s32.totalorder %s24, 1
      %p320 = scmp.ne.s32.totalorder %s315, %s317
      %p321 = scmp.eq.s32.totalorder %s24, 0
      %p322 = por %p320, %p321
      %p323 = scmp.ne.s32.totalorder %s315, %s317
      %p324 = scmp.eq.s32.totalorder %s29, 1
      %p325 = por %p323, %p324
      %p326 = scmp.ne.s32.totalorder %s317, %s318
      %p327 = scmp.eq.s32.totalorder %s29, 0
      %p328 = por %p326, %p327
      %p329 = scmp.ne.s32.totalorder %s317, %s318
      %p330 = scmp.eq.s32.totalorder %s30, 1
      %p331 = por %p329, %p330
      %p333 = scmp.ne.s32.totalorder %s318, %s332
      %p334 = scmp.eq.s32.totalorder %s30, 0
      %p335 = por %p333, %p334
      %s337 = sadd.s32 %s336, 1
      %p340 = scmp.eq.s32.totalorder %s24, 1
      %p341 = scmp.ne.s32.totalorder %s336, %s338
      %p342 = scmp.eq.s32.totalorder %s24, 0
      %p343 = por %p341, %p342
      %p344 = scmp.ne.s32.totalorder %s336, %s338
      %p345 = scmp.eq.s32.totalorder %s29, 1
      %p346 = por %p344, %p345
      %p347 = scmp.ne.s32.totalorder %s338, %s339
      %p348 = scmp.eq.s32.totalorder %s29, 0
      %p349 = por %p347, %p348
      %p350 = scmp.ne.s32.totalorder %s338, %s339
      %p351 = scmp.eq.s32.totalorder %s30, 1
      %p352 = por %p350, %p351
      %p354 = scmp.ne.s32.totalorder %s339, %s353
      %p355 = scmp.eq.s32.totalorder %s30, 0
      %p356 = por %p354, %p355
      %s357 = ssub.s32 %s24, %s31
      %p358 = scmp.eq.s32.totalorder %s357, 0
      %s360 = sadd.s32 %s359, 1
      %s361 = scalar_select %p358, %s359, %s360
      %p364 = pneg %p358
      %p365 = scmp.eq.s32.totalorder %s24, 1
      %p366 = por %p364, %p365
      %p367 = scmp.ne.s32.totalorder %s359, %s362
      %p368 = scmp.eq.s32.totalorder %s24, 0
      %p369 = por %p367, %p368
      %p370 = scmp.ne.s32.totalorder %s359, %s362
      %p371 = scmp.eq.s32.totalorder %s29, 1
      %p372 = por %p370, %p371
      %p373 = scmp.ne.s32.totalorder %s362, %s363
      %p374 = scmp.eq.s32.totalorder %s29, 0
      %p375 = por %p373, %p374
      %p376 = scmp.ne.s32.totalorder %s362, %s363
      %p377 = scmp.eq.s32.totalorder %s30, 1
      %p378 = por %p376, %p377
      %p380 = scmp.ne.s32.totalorder %s363, %s379
      %p381 = scmp.eq.s32.totalorder %s30, 0
      %p382 = por %p380, %p381
      %s383 = ssub.s32 %s24, %s31
      %p384 = scmp.eq.s32.totalorder %s383, 0
      %s386 = sadd.s32 %s385, 1
      %s387 = scalar_select %p384, %s385, %s386
      %p390 = pneg %p384
      %p391 = scmp.eq.s32.totalorder %s24, 1
      %p392 = por %p390, %p391
      %p393 = scmp.ne.s32.totalorder %s385, %s388
      %p394 = scmp.eq.s32.totalorder %s24, 0
      %p395 = por %p393, %p394
      %p396 = scmp.ne.s32.totalorder %s385, %s388
      %p397 = scmp.eq.s32.totalorder %s29, 1
      %p398 = por %p396, %p397
      %p399 = scmp.ne.s32.totalorder %s388, %s389
      %p400 = scmp.eq.s32.totalorder %s29, 0
      %p401 = por %p399, %p400
      %p402 = scmp.ne.s32.totalorder %s388, %s389
      %p403 = scmp.eq.s32.totalorder %s30, 1
      %p404 = por %p402, %p403
      %p406 = scmp.ne.s32.totalorder %s389, %s405
      %p407 = scmp.eq.s32.totalorder %s30, 0
      %p408 = por %p406, %p407
      %p409 = scmp.le.s32.totalorder 1, %s24
      %p410 = scmp.lt.s32.totalorder %s24, 3
      %p411 = pnand %p409, %p410
      %p412 = pneg %p411
      // Predicated region
      $region9: #{vposer_forward.1} parent=5 // pred_check
        _
      $region10: #{vposer_forward.1} parent=5 // pred_check_branch
        %414 = sbr.rel (%p411) target = $region12
      $region11: #{vposer_forward.1} parent=5 // pred_region
        %s415 = ssub.s32 %s24, 1
        // Predicated region
        $region13: #{vposer_forward.1} parent=11 // pred_check
          %p416 = pneg %p97
        $region14: #{vposer_forward.1} parent=11 // pred_check_branch
          %418 = sbr.rel (%p416) target = $region16
        $region15: #{vposer_forward.1} parent=11 // pred_region
          _
        $region16: #{vposer_forward.1} parent=11 // pred_fallthru
          _
        // Predicated region
        $region17: #{vposer_forward.1} parent=11 // pred_check
          %p419 = pneg %p118
        $region18: #{vposer_forward.1} parent=11 // pred_check_branch
          %421 = sbr.rel (%p419) target = $region20
        $region19: #{vposer_forward.1} parent=11 // pred_region
          _
        $region20: #{vposer_forward.1} parent=11 // pred_fallthru
          _
        // Predicated region
        $region21: #{vposer_forward.1} parent=11 // pred_check
          %p422 = pneg %p139
        $region22: #{vposer_forward.1} parent=11 // pred_check_branch
          %424 = sbr.rel (%p422) target = $region24
        $region23: #{vposer_forward.1} parent=11 // pred_region
          _
        $region24: #{vposer_forward.1} parent=11 // pred_fallthru
          _
        // Predicated region
        $region25: #{vposer_forward.1} parent=11 // pred_check
          %p425 = pneg %p160
        $region26: #{vposer_forward.1} parent=11 // pred_check_branch
          %427 = sbr.rel (%p425) target = $region28
        $region27: #{vposer_forward.1} parent=11 // pred_region
          _
        $region28: #{vposer_forward.1} parent=11 // pred_fallthru
          _
        // Predicated region
        $region29: #{vposer_forward.1} parent=11 // pred_check
          %p428 = pneg %p181
        $region30: #{vposer_forward.1} parent=11 // pred_check_branch
          %430 = sbr.rel (%p428) target = $region32
        $region31: #{vposer_forward.1} parent=11 // pred_region
          _
        $region32: #{vposer_forward.1} parent=11 // pred_fallthru
          _
        // Predicated region
        $region33: #{vposer_forward.1} parent=11 // pred_check
          %p431 = pneg %p202
        $region34: #{vposer_forward.1} parent=11 // pred_check_branch
          %433 = sbr.rel (%p431) target = $region36
        $region35: #{vposer_forward.1} parent=11 // pred_region
          _
        $region36: #{vposer_forward.1} parent=11 // pred_fallthru
          _
        // Predicated region
        $region37: #{vposer_forward.1} parent=11 // pred_check
          %p434 = pneg %p223
        $region38: #{vposer_forward.1} parent=11 // pred_check_branch
          %436 = sbr.rel (%p434) target = $region40
        $region39: #{vposer_forward.1} parent=11 // pred_region
          _
        $region40: #{vposer_forward.1} parent=11 // pred_fallthru
          _
        // Predicated region
        $region41: #{vposer_forward.1} parent=11 // pred_check
          %p437 = pneg %p244
        $region42: #{vposer_forward.1} parent=11 // pred_check_branch
          %439 = sbr.rel (%p437) target = $region44
        $region43: #{vposer_forward.1} parent=11 // pred_region
          _
        $region44: #{vposer_forward.1} parent=11 // pred_fallthru
          _
        // Predicated region
        $region45: #{vposer_forward.1} parent=11 // pred_check
          %p440 = pneg %p265
        $region46: #{vposer_forward.1} parent=11 // pred_check_branch
          %442 = sbr.rel (%p440) target = $region48
        $region47: #{vposer_forward.1} parent=11 // pred_region
          _
        $region48: #{vposer_forward.1} parent=11 // pred_fallthru
          _
        // Predicated region
        $region49: #{vposer_forward.1} parent=11 // pred_check
          %p443 = pneg %p286
        $region50: #{vposer_forward.1} parent=11 // pred_check_branch
          %445 = sbr.rel (%p443) target = $region52
        $region51: #{vposer_forward.1} parent=11 // pred_region
          _
        $region52: #{vposer_forward.1} parent=11 // pred_fallthru
          _
        // Predicated region
        $region53: #{vposer_forward.1} parent=11 // pred_check
          %p446 = pneg %p307
        $region54: #{vposer_forward.1} parent=11 // pred_check_branch
          %448 = sbr.rel (%p446) target = $region56
        $region55: #{vposer_forward.1} parent=11 // pred_region
          _
        $region56: #{vposer_forward.1} parent=11 // pred_fallthru
          _
        // Predicated region
        $region57: #{vposer_forward.1} parent=11 // pred_check
          %p449 = pneg %p328
        $region58: #{vposer_forward.1} parent=11 // pred_check_branch
          %451 = sbr.rel (%p449) target = $region60
        $region59: #{vposer_forward.1} parent=11 // pred_region
          _
        $region60: #{vposer_forward.1} parent=11 // pred_fallthru
          _
        // Predicated region
        $region61: #{vposer_forward.1} parent=11 // pred_check
          %p452 = pneg %p349
        $region62: #{vposer_forward.1} parent=11 // pred_check_branch
          %454 = sbr.rel (%p452) target = $region64
        $region63: #{vposer_forward.1} parent=11 // pred_region
          %s456 = ssub.s32 6144, 6144
          %457 = vsyncadd [#allocation3], %s456
          %s458 = sshll.u32 [#allocation2], 4
          %s459 = int_to_ptr.vmem [resolvable:$true] %s458
          %464 = dma.hbm_to_vmem [thread:$0]  %s14, 6144, %s459, [#allocation3], 256, 256, 16
        $region64: #{vposer_forward.1} parent=11 // pred_fallthru
          _
      $region12: #{vposer_forward.1} parent=5 // pred_fallthru
        _
      %p465 = scmp.lt.s32.totalorder %s24, 2
      // Predicated region
      $region65: #{vposer_forward.1} parent=5 // pred_check
        %p466 = pneg %p465
      $region66: #{vposer_forward.1} parent=5 // pred_check_branch
        %468 = sbr.rel (%p466) target = $region68
      $region67: #{vposer_forward.1} parent=5 // pred_region
        // Predicated region
        $region69: #{vposer_forward.1} parent=67 // pred_check
          %p469 = pneg %p44
        $region70: #{vposer_forward.1} parent=67 // pred_check_branch
          %471 = sbr.rel (%p469) target = $region72
        $region71: #{vposer_forward.1} parent=67 // pred_region
          %p472 = scmp.lt.s32.totalorder %s24, 1
          %s473 = scalar_select %p472, %s24, 1
          %s474 = smul.addr %s473, 4
          %s475 = scalar_lea.vmem %s0, %s474
        $region72: #{vposer_forward.1} parent=67 // pred_fallthru
          _
        // Predicated region
        $region73: #{vposer_forward.1} parent=67 // pred_check
          %p476 = pneg %p70
        $region74: #{vposer_forward.1} parent=67 // pred_check_branch
          %478 = sbr.rel (%p476) target = $region76
        $region75: #{vposer_forward.1} parent=67 // pred_region
          %p479 = scmp.lt.s32.totalorder %s24, 1
          %s480 = scalar_select %p479, %s24, 1
          %s481 = smul.addr %s480, 8
          %s482 = scalar_lea.vmem %s1, %s481
        $region76: #{vposer_forward.1} parent=67 // pred_fallthru
          _
      $region68: #{vposer_forward.1} parent=5 // pred_fallthru
        _
      %p483 = scmp.le.s32.totalorder 1, %s24
      %p484 = scmp.lt.s32.totalorder %s24, 3
      %p485 = pnand %p483, %p484
      %p486 = pneg %p485
      // Predicated region
      $region77: #{vposer_forward.1} parent=5 // pred_check
        _
      $region78: #{vposer_forward.1} parent=5 // pred_check_branch
        %488 = sbr.rel (%p485) target = $region80
      $region79: #{vposer_forward.1} parent=5 // pred_region
        %s489 = ssub.s32 %s24, 1
        // Predicated region
        $region81: #{vposer_forward.1} parent=79 // pred_check
          %p490 = pneg %p349
        $region82: #{vposer_forward.1} parent=79 // pred_check_branch
          %492 = sbr.rel (%p490) target = $region84
        $region83: #{vposer_forward.1} parent=79 // pred_region
          %493 = dma.done [#allocation3], 6144
        $region84: #{vposer_forward.1} parent=79 // pred_fallthru
          _
        %p494 = scmp.lt.s32.totalorder %s29, 1
        %s495 = scalar_select %p494, %s29, 1
        %s496 = smul.addr %s495, 4
        %s497 = scalar_lea.vmem %s0, %s496
        %p498 = pneg %p50
        %p499 = pneg %p47
        %p500 = scmp.lt.s32.totalorder %s29, 1
        %s501 = scalar_select %p500, %s29, 1
        %s502 = smul.addr %s501, 8
        %s503 = scalar_lea.vmem %s1, %s502
        %p504 = pneg %p76
        %p505 = pneg %p73
        %p506 = pneg %p97
        %p507 = pneg %p94
        %p508 = pneg %p118
        %p509 = pneg %p115
        %p510 = pneg %p139
        %p511 = pneg %p136
        %p512 = pneg %p160
        %p513 = pneg %p157
        %p514 = pneg %p181
        %p515 = pneg %p178
        %p516 = pneg %p202
        %p517 = pneg %p199
        %p518 = pneg %p223
        %p519 = pneg %p220
        %p520 = pneg %p244
        %p521 = pneg %p241
        %p522 = pneg %p265
        %p523 = pneg %p262
        %p524 = pneg %p286
        %p525 = pneg %p283
        %p526 = pneg %p307
        %p527 = pneg %p304
        %p528 = pneg %p328
        %p529 = pneg %p325
        %p530 = pneg %p349
        %p531 = pneg %p346
        %p532 = pneg %p375
        %p533 = pneg %p372
        %p534 = scmp.lt.s32.totalorder %s29, 1
        %s535 = scalar_select %p534, %s29, 1
        %s536 = smul.addr %s535, 2
        %s537 = smul.addr %s536, 8
        %s538 = scalar_lea.vmem %s15, %s537
        %p539 = pneg %p401
        %p540 = pneg %p398
        %p541 = scmp.lt.s32.totalorder %s29, 1
        %s542 = scalar_select %p541, %s29, 1
        %s543 = smul.addr %s542, 8
        %s544 = scalar_lea.vmem %s16, %s543
        %p545 = scmp.lt.s32.totalorder %s29, 1
        %s546 = scalar_select %p545, %s29, 1
        %s547 = smul.addr %s546, 4
        %s548 = scalar_lea.vmem %s0, %s547
        %p549 = scmp.lt.s32.totalorder %s29, 1
        %s550 = scalar_select %p549, %s29, 1
        %s551 = smul.addr %s550, 8
        %s552 = scalar_lea.vmem %s1, %s551
        %p553 = scmp.lt.s32.totalorder %s29, 1
        %s554 = scalar_select %p553, %s29, 1
        %s555 = smul.addr %s554, 2
        %s556 = smul.addr %s555, 8
        %s557 = scalar_lea.vmem %s15, %s556
        %p558 = scmp.lt.s32.totalorder %s29, 1
        %s559 = scalar_select %p558, %s29, 1
        %s560 = smul.addr %s559, 8
        %s561 = scalar_lea.vmem %s16, %s560
        %v563 = vld [vmem:[%s548] sm:$0xf]
        %v564 = vld [vmem:[%s2] sm:$0xf]
        %v565 = vld [vmem:[%s2 + $0x4] sm:$0xf]
        %v566 = vld [vmem:[%s2 + $0x8] sm:$0xf]
        %v567 = vld [vmem:[%s2 + $0xc] sm:$0xf]
        %v568 = vld [vmem:[%s2 + $0x10] sm:$0xf]
        %v569 = vld [vmem:[%s2 + $0x14] sm:$0xf]
        %v570 = vld [vmem:[%s2 + $0x18] sm:$0xf]
        %v571 = vld [vmem:[%s2 + $0x1c] sm:$0xf]
        %v572 = vld [vmem:[%s3] sm:$0x1]
        %v574 = vlaneseq
        %v575 = vshrl.u32 %v574, 7
        %v576 = vsub.s32 0, %v575
        %v577 = vrot.slane %v572, %v576
        %v587 = vunpack.c.l.b16 %v564
        %v588 = vunpack.c.l.b16 %v565
        %v589 = vunpack.c.l.b16 %v566
        %v590 = vunpack.c.l.b16 %v567
        %v591 = vunpack.c.l.b16 %v568
        %v592 = vunpack.c.l.b16 %v569
        %v593 = vunpack.c.l.b16 %v570
        %v594 = vunpack.c.l.b16 %v571
        %v595 = vpack.c.b16 %v588, %v587
        %v596 = vpack.c.b16 %v590, %v589
        %v597 = vpack.c.b16 %v592, %v591
        %v598 = vpack.c.b16 %v594, %v593
        %vm602 = vcmask 515072
        %v604 = vsel %vm602, %v563, 0
        %vm606 = vcmask 1046528
        %vm607 = vcmask 1047552
        %v608 = vsel %vm606, 4294967295, 65535
        %v609 = vsel %vm607, %v608, 0
        %v611 = vand.u32 %v598, %v609
        %613 = vmatprep.subr.bf16.mxu0 0
        %614 = vmatpush1.bf16.msra.mxu0 %v595
        %615 = vmatprep.subr.bf16.mxu0 0
        %616 = vmatpush1.bf16.msra.mxu0 %v596
        %617 = vmatprep.subr.bf16.mxu0 0
        %618 = vmatpush1.bf16.msra.mxu0 %v597
        %619 = vmatprep.subr.bf16.mxu0 0
        %620 = vmatpush1.bf16.msra.mxu0 %v611
        %621 = vmatprep.subr.bf16.mxu0 0
        %622 = vmatpush1.bf16.msra.mxu0 0
        %623 = vmatprep.subr.bf16.mxu0 0
        %624 = vmatpush1.bf16.msra.mxu0 0
        %625 = vmatprep.subr.bf16.mxu0 0
        %626 = vmatpush1.bf16.msra.mxu0 0
        %627 = vmatprep.subr.bf16.mxu0 0
        %628 = vmatpush1.bf16.msra.mxu0 0
        %629 = vmatprep.subr.bf16.mxu0 0
        %630 = vmatpush1.bf16.msra.mxu0 0
        %631 = vmatprep.subr.bf16.mxu0 0
        %632 = vmatpush1.bf16.msra.mxu0 0
        %633 = vmatprep.subr.bf16.mxu0 0
        %634 = vmatpush1.bf16.msra.mxu0 0
        %635 = vmatprep.subr.bf16.mxu0 0
        %636 = vmatpush1.bf16.msra.mxu0 0
        %637 = vmatprep.subr.bf16.mxu0 0
        %638 = vmatpush1.bf16.msra.mxu0 0
        %639 = vmatprep.subr.bf16.mxu0 0
        %640 = vmatpush1.bf16.msra.mxu0 0
        %641 = vmatprep.subr.bf16.mxu0 0
        %642 = vmatpush1.bf16.msra.mxu0 0
        %643 = vmatprep.subr.bf16.mxu0 0
        %644 = vmatpush1.bf16.msra.mxu0 0
        %645 = vmatprep.mubr.bf16.mxu0 0
        %646 = vmatmul.mubr.bf16.gmra.mrb[0].mxu0 %v604
        %v647 = vpop.f32.mrb[0].mxu0
        %v648 = vadd.f32 %v577, %v647
        %v649 = vpop.f32.mrb[0].mxu0
        %v650 = vpop.f32.mrb[0].mxu0
        %v651 = vpop.f32.mrb[0].mxu0
        %652 = vdwg.mxu0
        %v653 = vmul.f32 %v648, 0.2
        %v654 = vmax.f32 %v648, %v653
        %v655 = vpack.c.bf16 %v654, %v654
        %v656 = vld [vmem:[%s4] sm:$0xf]
        %v657 = vld [vmem:[%s4 + $0x4] sm:$0xf]
        %v658 = vld [vmem:[%s4 + $0x8] sm:$0xf]
        %v659 = vld [vmem:[%s4 + $0xc] sm:$0xf]
        %v660 = vld [vmem:[%s4 + $0x10] sm:$0xf]
        %v661 = vld [vmem:[%s4 + $0x14] sm:$0xf]
        %v662 = vld [vmem:[%s4 + $0x18] sm:$0xf]
        %v663 = vld [vmem:[%s4 + $0x1c] sm:$0xf]
        %v664 = vld [vmem:[%s5] sm:$0x1]
        %v666 = vlaneseq
        %v667 = vshrl.u32 %v666, 7
        %v668 = vsub.s32 0, %v667
        %v669 = vrot.slane %v664, %v668
        %v679 = vunpack.c.l.b16 %v656
        %v680 = vunpack.c.l.b16 %v657
        %v681 = vunpack.c.l.b16 %v658
        %v682 = vunpack.c.l.b16 %v659
        %v683 = vunpack.c.l.b16 %v660
        %v684 = vunpack.c.l.b16 %v661
        %v685 = vunpack.c.l.b16 %v662
        %v686 = vunpack.c.l.b16 %v663
        %v687 = vpack.c.b16 %v680, %v679
        %v688 = vpack.c.b16 %v682, %v681
        %v689 = vpack.c.b16 %v684, %v683
        %v690 = vpack.c.b16 %v686, %v685
        %vm695 = vcmask 523264
        %v697 = vsel %vm695, %v655, 0
        %699 = vmatprep.subr.bf16.mxu0 0
        %700 = vmatpush1.bf16.msra.mxu0 %v687
        %701 = vmatprep.subr.bf16.mxu0 0
        %702 = vmatpush1.bf16.msra.mxu0 %v688
        %703 = vmatprep.subr.bf16.mxu0 0
        %704 = vmatpush1.bf16.msra.mxu0 %v689
        %705 = vmatprep.subr.bf16.mxu0 0
        %706 = vmatpush1.bf16.msra.mxu0 %v690
        %707 = vmatprep.subr.bf16.mxu0 0
        %708 = vmatpush1.bf16.msra.mxu0 0
        %709 = vmatprep.subr.bf16.mxu0 0
        %710 = vmatpush1.bf16.msra.mxu0 0
        %711 = vmatprep.subr.bf16.mxu0 0
        %712 = vmatpush1.bf16.msra.mxu0 0
        %713 = vmatprep.subr.bf16.mxu0 0
        %714 = vmatpush1.bf16.msra.mxu0 0
        %715 = vmatprep.subr.bf16.mxu0 0
        %716 = vmatpush1.bf16.msra.mxu0 0
        %717 = vmatprep.subr.bf16.mxu0 0
        %718 = vmatpush1.bf16.msra.mxu0 0
        %719 = vmatprep.subr.bf16.mxu0 0
        %720 = vmatpush1.bf16.msra.mxu0 0
        %721 = vmatprep.subr.bf16.mxu0 0
        %722 = vmatpush1.bf16.msra.mxu0 0
        %723 = vmatprep.subr.bf16.mxu0 0
        %724 = vmatpush1.bf16.msra.mxu0 0
        %725 = vmatprep.subr.bf16.mxu0 0
        %726 = vmatpush1.bf16.msra.mxu0 0
        %727 = vmatprep.subr.bf16.mxu0 0
        %728 = vmatpush1.bf16.msra.mxu0 0
        %729 = vmatprep.subr.bf16.mxu0 0
        %730 = vmatpush1.bf16.msra.mxu0 0
        %731 = vmatprep.mubr.bf16.mxu0 0
        %732 = vmatmul.mubr.bf16.gmra.mrb[0].mxu0 %v697
        %v733 = vpop.f32.mrb[0].mxu0
        %v734 = vadd.f32 %v669, %v733
        %v735 = vpop.f32.mrb[0].mxu0
        %v736 = vpop.f32.mrb[0].mxu0
        %v737 = vpop.f32.mrb[0].mxu0
        %738 = vdwg.mxu0
        %v739 = vmul.f32 %v734, 0.2
        %v740 = vmax.f32 %v734, %v739
        %v741 = vpack.c.bf16 %v740, %v740
        %v742 = vld [vmem:[%s6] sm:$0xff]
        %v743 = vld [vmem:[%s6 + $0x8] sm:$0xff]
        %v744 = vld [vmem:[%s6 + $0x10] sm:$0xff]
        %v745 = vld [vmem:[%s6 + $0x18] sm:$0xff]
        %v746 = vld [vmem:[%s6 + $0x20] sm:$0xff]
        %v747 = vld [vmem:[%s6 + $0x28] sm:$0xff]
        %v748 = vld [vmem:[%s6 + $0x30] sm:$0xff]
        %v749 = vld [vmem:[%s6 + $0x38] sm:$0xff]
        %v750 = vld [vmem:[%s7] sm:$0x3]
        %v752 = vlaneseq
        %v753 = vshrl.u32 %v752, 7
        %v754 = vsub.s32 0, %v753
        %v755 = vrot.slane %v750, %v754
        %v756 = vlaneseq
        %v757 = vshrl.u32 %v756, 7
        %v758 = vsub.s32 1, %v757
        %v759 = vrot.slane %v750, %v758
        %v770 = vunpack.c.l.b16 %v742
        %v771 = vunpack.c.h.b16 %v742
        %v772 = vunpack.c.l.b16 %v743
        %v773 = vunpack.c.h.b16 %v743
        %v774 = vunpack.c.l.b16 %v744
        %v775 = vunpack.c.h.b16 %v744
        %v776 = vunpack.c.l.b16 %v745
        %v777 = vunpack.c.h.b16 %v745
        %v778 = vunpack.c.l.b16 %v746
        %v779 = vunpack.c.h.b16 %v746
        %v780 = vunpack.c.l.b16 %v747
        %v781 = vunpack.c.h.b16 %v747
        %v782 = vunpack.c.l.b16 %v748
        %v783 = vunpack.c.h.b16 %v748
        %v784 = vunpack.c.l.b16 %v749
        %v785 = vunpack.c.h.b16 %v749
        %v786 = vpack.c.b16 %v772, %v770
        %v787 = vpack.c.b16 %v773, %v771
        %v788 = vpack.c.b16 %v776, %v774
        %v789 = vpack.c.b16 %v777, %v775
        %v790 = vpack.c.b16 %v780, %v778
        %v791 = vpack.c.b16 %v781, %v779
        %v792 = vpack.c.b16 %v784, %v782
        %v793 = vpack.c.b16 %v785, %v783
        %v803 = vsel %vm695, %v741, 0
        %805 = vmatprep.subr.bf16.mxu0 %v787
        %806 = vmatpush1.bf16.msra.mxu0 %v786
        %807 = vmatprep.subr.bf16.mxu0 %v789
        %808 = vmatpush1.bf16.msra.mxu0 %v788
        %809 = vmatprep.subr.bf16.mxu0 %v791
        %810 = vmatpush1.bf16.msra.mxu0 %v790
        %811 = vmatprep.subr.bf16.mxu0 %v793
        %812 = vmatpush1.bf16.msra.mxu0 %v792
        %813 = vmatprep.subr.bf16.mxu0 0
        %814 = vmatpush1.bf16.msra.mxu0 0
        %815 = vmatprep.subr.bf16.mxu0 0
        %816 = vmatpush1.bf16.msra.mxu0 0
        %817 = vmatprep.subr.bf16.mxu0 0
        %818 = vmatpush1.bf16.msra.mxu0 0
        %819 = vmatprep.subr.bf16.mxu0 0
        %820 = vmatpush1.bf16.msra.mxu0 0
        %821 = vmatprep.subr.bf16.mxu0 0
        %822 = vmatpush1.bf16.msra.mxu0 0
        %823 = vmatprep.subr.bf16.mxu0 0
        %824 = vmatpush1.bf16.msra.mxu0 0
        %825 = vmatprep.subr.bf16.mxu0 0
        %826 = vmatpush1.bf16.msra.mxu0 0
        %827 = vmatprep.subr.bf16.mxu0 0
        %828 = vmatpush1.bf16.msra.mxu0 0
        %829 = vmatprep.subr.bf16.mxu0 0
        %830 = vmatpush1.bf16.msra.mxu0 0
        %831 = vmatprep.subr.bf16.mxu0 0
        %832 = vmatpush1.bf16.msra.mxu0 0
        %833 = vmatprep.subr.bf16.mxu0 0
        %834 = vmatpush1.bf16.msra.mxu0 0
        %835 = vmatprep.subr.bf16.mxu0 0
        %836 = vmatpush1.bf16.msra.mxu0 0
        %837 = vmatprep.mubr.bf16.mxu0 0
        %838 = vmatmul.mubr.bf16.gmra.mrb[0].mxu0 %v803
        %v839 = vpop.f32.mrb[0].mxu0
        %v840 = vadd.f32 %v755, %v839
        %v841 = vpop.f32.mrb[0].mxu0
        %v842 = vadd.f32 %v759, %v841
        %v843 = vpop.f32.mrb[0].mxu0
        %v844 = vpop.f32.mrb[0].mxu0
        %845 = vdwg.mxu0
        %v846 = vmax.f32 %v842, 0.0
        %v847 = vand.u32 2147483647, %v842
        %v848 = vsub.f32 0.0, %v847
        %v849 = vmul.f32 %v848, 1.442695
        %v850 = vpow.pop %v849
        %v851 = vadd.f32 %v850, 1.0
        %v852 = vlog2.pop %v851
        %v853 = vmul.f32 %v852, 0.6931472
        %v854 = vmul.f32 -0.5, %v850
        %v855 = vadd.f32 %v854, 1.0
        %v856 = vmul.f32 %v855, %v850
        %v857 = vand.u32 2147483647, %v850
        %vm858 = vcmp.lt.f32.partialorder %v857, 0.0004427343
        %v859 = vsel %vm858, %v856, %v853
        %v860 = vadd.f32 %v846, %v859
        %v861 = vld [vmem:[%s552] sm:$0xff]
        %v862 = vmul.f32 %v861, %v860
        %v863 = vadd.f32 %v840, %v862
        %v864 = vpack.c.bf16 %v863, %v863
        %v865 = vld [vmem:[%s8] sm:$0xf]
        %v866 = vld [vmem:[%s8 + $0x4] sm:$0xf]
        %v867 = vld [vmem:[%s9] sm:$0x1]
        %v869 = vlaneseq
        %v870 = vshrl.u32 %v869, 7
        %v871 = vsub.s32 0, %v870
        %v872 = vrot.slane %v867, %v871
        %v876 = vunpack.c.l.b16 %v865
        %v877 = vunpack.c.l.b16 %v866
        %v878 = vpack.c.b16 %v877, %v876
        %vm880 = vcmask 130048
        %v882 = vsel %vm880, %v864, 0
        %884 = vmatprep.subr.bf16.mxu0 0
        %885 = vmatpush1.bf16.msra.mxu0 %v878
        %886 = vmatprep.subr.bf16.mxu0 0
        %887 = vmatpush1.bf16.msra.mxu0 0
        %888 = vmatprep.subr.bf16.mxu0 0
        %889 = vmatpush1.bf16.msra.mxu0 0
        %890 = vmatprep.subr.bf16.mxu0 0
        %891 = vmatpush1.bf16.msra.mxu0 0
        %892 = vmatprep.subr.bf16.mxu0 0
        %893 = vmatpush1.bf16.msra.mxu0 0
        %894 = vmatprep.subr.bf16.mxu0 0
        %895 = vmatpush1.bf16.msra.mxu0 0
        %896 = vmatprep.subr.bf16.mxu0 0
        %897 = vmatpush1.bf16.msra.mxu0 0
        %898 = vmatprep.subr.bf16.mxu0 0
        %899 = vmatpush1.bf16.msra.mxu0 0
        %900 = vmatprep.subr.bf16.mxu0 0
        %901 = vmatpush1.bf16.msra.mxu0 0
        %902 = vmatprep.subr.bf16.mxu0 0
        %903 = vmatpush1.bf16.msra.mxu0 0
        %904 = vmatprep.subr.bf16.mxu0 0
        %905 = vmatpush1.bf16.msra.mxu0 0
        %906 = vmatprep.subr.bf16.mxu0 0
        %907 = vmatpush1.bf16.msra.mxu0 0
        %908 = vmatprep.subr.bf16.mxu0 0
        %909 = vmatpush1.bf16.msra.mxu0 0
        %910 = vmatprep.subr.bf16.mxu0 0
        %911 = vmatpush1.bf16.msra.mxu0 0
        %912 = vmatprep.subr.bf16.mxu0 0
        %913 = vmatpush1.bf16.msra.mxu0 0
        %914 = vmatprep.subr.bf16.mxu0 0
        %915 = vmatpush1.bf16.msra.mxu0 0
        %916 = vmatprep.mubr.bf16.mxu0 0
        %917 = vmatmul.mubr.bf16.gmra.mrb[0].mxu0 %v882
        %v918 = vpop.f32.mrb[0].mxu0
        %v919 = vadd.f32 %v872, %v918
        %v920 = vpop.f32.mrb[0].mxu0
        %v921 = vpop.f32.mrb[0].mxu0
        %v922 = vpop.f32.mrb[0].mxu0
        %923 = vdwg.mxu0
        %v924 = vmul.f32 %v919, 0.2
        %v925 = vmax.f32 %v919, %v924
        %v926 = vpack.c.bf16 %v925, %v925
        %v927 = vld [vmem:[%s10] sm:$0xf]
        %v928 = vld [vmem:[%s10 + $0x4] sm:$0xf]
        %v929 = vld [vmem:[%s10 + $0x8] sm:$0xf]
        %v930 = vld [vmem:[%s10 + $0xc] sm:$0xf]
        %v931 = vld [vmem:[%s10 + $0x10] sm:$0xf]
        %v932 = vld [vmem:[%s10 + $0x14] sm:$0xf]
        %v933 = vld [vmem:[%s10 + $0x18] sm:$0xf]
        %v934 = vld [vmem:[%s10 + $0x1c] sm:$0xf]
        %v935 = vld [vmem:[%s11] sm:$0x1]
        %v937 = vlaneseq
        %v938 = vshrl.u32 %v937, 7
        %v939 = vsub.s32 0, %v938
        %v940 = vrot.slane %v935, %v939
        %v950 = vunpack.c.l.b16 %v927
        %v951 = vunpack.c.l.b16 %v928
        %v952 = vunpack.c.l.b16 %v929
        %v953 = vunpack.c.l.b16 %v930
        %v954 = vunpack.c.l.b16 %v931
        %v955 = vunpack.c.l.b16 %v932
        %v956 = vunpack.c.l.b16 %v933
        %v957 = vunpack.c.l.b16 %v934
        %v958 = vpack.c.b16 %v951, %v950
        %v959 = vpack.c.b16 %v953, %v952
        %v960 = vpack.c.b16 %v955, %v954
        %v961 = vpack.c.b16 %v957, %v956
        %v967 = vsel %vm695, %v926, 0
        %969 = vmatprep.subr.bf16.mxu0 0
        %970 = vmatpush1.bf16.msra.mxu0 %v958
        %971 = vmatprep.subr.bf16.mxu0 0
        %972 = vmatpush1.bf16.msra.mxu0 %v959
        %973 = vmatprep.subr.bf16.mxu0 0
        %974 = vmatpush1.bf16.msra.mxu0 %v960
        %975 = vmatprep.subr.bf16.mxu0 0
        %976 = vmatpush1.bf16.msra.mxu0 %v961
        %977 = vmatprep.subr.bf16.mxu0 0
        %978 = vmatpush1.bf16.msra.mxu0 0
        %979 = vmatprep.subr.bf16.mxu0 0
        %980 = vmatpush1.bf16.msra.mxu0 0
        %981 = vmatprep.subr.bf16.mxu0 0
        %982 = vmatpush1.bf16.msra.mxu0 0
        %983 = vmatprep.subr.bf16.mxu0 0
        %984 = vmatpush1.bf16.msra.mxu0 0
        %985 = vmatprep.subr.bf16.mxu0 0
        %986 = vmatpush1.bf16.msra.mxu0 0
        %987 = vmatprep.subr.bf16.mxu0 0
        %988 = vmatpush1.bf16.msra.mxu0 0
        %989 = vmatprep.subr.bf16.mxu0 0
        %990 = vmatpush1.bf16.msra.mxu0 0
        %991 = vmatprep.subr.bf16.mxu0 0
        %992 = vmatpush1.bf16.msra.mxu0 0
        %993 = vmatprep.subr.bf16.mxu0 0
        %994 = vmatpush1.bf16.msra.mxu0 0
        %995 = vmatprep.subr.bf16.mxu0 0
        %996 = vmatpush1.bf16.msra.mxu0 0
        %997 = vmatprep.subr.bf16.mxu0 0
        %998 = vmatpush1.bf16.msra.mxu0 0
        %999 = vmatprep.subr.bf16.mxu0 0
        %1000 = vmatpush1.bf16.msra.mxu0 0
        %1001 = vmatprep.mubr.bf16.mxu0 0
        %1002 = vmatmul.mubr.bf16.gmra.mrb[0].mxu0 %v967
        %v1003 = vpop.f32.mrb[0].mxu0
        %v1004 = vadd.f32 %v940, %v1003
        %v1005 = vpop.f32.mrb[0].mxu0
        %v1006 = vpop.f32.mrb[0].mxu0
        %v1007 = vpop.f32.mrb[0].mxu0
        %1008 = vdwg.mxu0
        %v1009 = vmul.f32 %v1004, 0.2
        %v1010 = vmax.f32 %v1004, %v1009
        %v1011 = vld [vmem:[%s12] sm:$0xff]
        %v1012 = vld [vmem:[%s12 + $0x8] sm:$0xff]
        %v1013 = vld [vmem:[%s12 + $0x10] sm:$0xff]
        %v1014 = vld [vmem:[%s12 + $0x18] sm:$0xff]
        %v1015 = vld [vmem:[%s12 + $0x20] sm:$0xff]
        %v1016 = vld [vmem:[%s12 + $0x28] sm:$0xff]
        %v1017 = vld [vmem:[%s12 + $0x30] sm:$0xff]
        %v1018 = vld [vmem:[%s12 + $0x38] sm:$0xff]
        %v1019 = vld [vmem:[%s13] sm:$0x1]
        %v1021 = vlaneseq
        %v1022 = vshrl.u32 %v1021, 7
        %v1023 = vsub.s32 0, %v1022
        %v1024 = vrot.slane %v1019, %v1023
        %v1027 = vsel %vm695, %v1010, 0
        %1029 = vmatprep.subr.mxu0 0.0
        %1030 = vmatpush1.msra.mxu0 %v1011
        %1031 = vmatprep.subr.mxu0 0.0
        %1032 = vmatpush1.msra.mxu0 %v1012
        %1033 = vmatprep.subr.mxu0 0.0
        %1034 = vmatpush1.msra.mxu0 %v1013
        %1035 = vmatprep.subr.mxu0 0.0
        %1036 = vmatpush1.msra.mxu0 %v1014
        %1037 = vmatprep.subr.mxu0 0.0
        %1038 = vmatpush1.msra.mxu0 %v1015
        %1039 = vmatprep.subr.mxu0 0.0
        %1040 = vmatpush1.msra.mxu0 %v1016
        %1041 = vmatprep.subr.mxu0 0.0
        %1042 = vmatpush1.msra.mxu0 %v1017
        %1043 = vmatprep.subr.mxu0 0.0
        %1044 = vmatpush1.msra.mxu0 %v1018
        %1045 = vmatprep.subr.mxu0 0.0
        %1046 = vmatpush1.msra.mxu0 0.0
        %1047 = vmatprep.subr.mxu0 0.0
        %1048 = vmatpush1.msra.mxu0 0.0
        %1049 = vmatprep.subr.mxu0 0.0
        %1050 = vmatpush1.msra.mxu0 0.0
        %1051 = vmatprep.subr.mxu0 0.0
        %1052 = vmatpush1.msra.mxu0 0.0
        %1053 = vmatprep.subr.mxu0 0.0
        %1054 = vmatpush1.msra.mxu0 0.0
        %1055 = vmatprep.subr.mxu0 0.0
        %1056 = vmatpush1.msra.mxu0 0.0
        %1057 = vmatprep.subr.mxu0 0.0
        %1058 = vmatpush1.msra.mxu0 0.0
        %1059 = vmatprep.subr.mxu0 0.0
        %1060 = vmatpush1.msra.mxu0 0.0
        %1061 = vmatprep.subr.mxu0 0.0
        %1062 = vmatpush1.msra.mxu0 0.0
        %1063 = vmatprep.subr.mxu0 0.0
        %1064 = vmatpush1.msra.mxu0 0.0
        %1065 = vmatprep.subr.mxu0 0.0
        %1066 = vmatpush1.msra.mxu0 0.0
        %1067 = vmatprep.subr.mxu0 0.0
        %1068 = vmatpush1.msra.mxu0 0.0
        %1069 = vmatprep.subr.mxu0 0.0
        %1070 = vmatpush1.msra.mxu0 0.0
        %1071 = vmatprep.subr.mxu0 0.0
        %1072 = vmatpush1.msra.mxu0 0.0
        %1073 = vmatprep.subr.mxu0 0.0
        %1074 = vmatpush1.msra.mxu0 0.0
        %1075 = vmatprep.subr.mxu0 0.0
        %1076 = vmatpush1.msra.mxu0 0.0
        %1077 = vmatprep.subr.mxu0 0.0
        %1078 = vmatpush1.msra.mxu0 0.0
        %1079 = vmatprep.subr.mxu0 0.0
        %1080 = vmatpush1.msra.mxu0 0.0
        %1081 = vmatprep.subr.mxu0 0.0
        %1082 = vmatpush1.msra.mxu0 0.0
        %1083 = vmatprep.subr.mxu0 0.0
        %1084 = vmatpush1.msra.mxu0 0.0
        %1085 = vmatprep.subr.mxu0 0.0
        %1086 = vmatpush1.msra.mxu0 0.0
        %1087 = vmatprep.subr.mxu0 0.0
        %1088 = vmatpush1.msra.mxu0 0.0
        %1089 = vmatprep.subr.mxu0 0.0
        %1090 = vmatpush1.msra.mxu0 0.0
        %1091 = vmatprep.subr.mxu0 0.0
        %1092 = vmatpush1.msra.mxu0 0.0
        %1093 = vmatprep.mubr.f32.mxu0 0.0
        %1094 = vmatmul.mubr.f32.gmra.mrb[0].mxu0 %v1027
        %v1095 = vpop.f32.mrb[0].mxu0
        %v1096 = vadd.f32 %v1024, %v1095
        %v1097 = vpop.f32.mrb[0].mxu0
        %1098 = vdwg.mxu0
        %v1099 = vmul.f32 %v1096, %v1096
        %1101 = vrot.lane.b32.xlu0 %v1099, 86
        %v1102 = vpop.permute.xlu0 %1101
        %v1104 = vadd.f32 %v1099, %v1102
        %1105 = vrot.lane.b32.xlu0 %v1099, 44
        %v1106 = vpop.permute.xlu0 %1105
        %v1108 = vadd.f32 %v1104, %v1106
        %v1109 = vmax.f32 %v1108, 1e-24
        %v1110 = vrsqrt.pop %v1109
        %v1111 = vmul.f32 %v1096, %v1110
        %1113 = vrot.lane.b32.xlu0 %v1110, 42
        %v1114 = vpop.permute.xlu0 %1113
        %v1116 = vmul.f32 %v1096, %v1114
        %1117 = vrot.lane.b32.xlu0 %v1110, 84
        %v1118 = vpop.permute.xlu0 %1117
        %v1120 = vmul.f32 %v1096, %v1118
        %1122 = vrot.lane.b32.xlu0 %v1096, 107
        %v1123 = vpop.permute.xlu0 %1122
        %v1125 = vmul.f32 %v1111, %v1123
        %v1126 = vmul.f32 %v1116, %v1123
        %1128 = vrot.lane.b32.xlu0 %v1126, 86
        %v1129 = vpop.permute.xlu0 %1128
        %v1131 = vadd.f32 %v1125, %v1129
        %v1132 = vmul.f32 %v1120, %v1123
        %1134 = vrot.lane.b32.xlu0 %v1132, 44
        %v1135 = vpop.permute.xlu0 %1134
        %v1137 = vadd.f32 %v1131, %v1135
        %v1138 = vmul.f32 %v1137, %v1111
        %1140 = vrot.lane.b32.xlu0 %v1138, 21
        %v1141 = vpop.permute.xlu0 %1140
        %v1143 = vsub.f32 %v1096, %v1141
        %1145 = vrot.lane.b32.xlu0 %v1116, 86
        %v1146 = vpop.permute.xlu0 %1145
        %v1148 = vmul.f32 %v1137, %v1146
        %1150 = vrot.lane.b32.xlu0 %v1148, 63
        %v1151 = vpop.permute.xlu0 %1150
        %v1153 = vsub.f32 %v1096, %v1151
        %1155 = vrot.lane.b32.xlu0 %v1120, 44
        %v1156 = vpop.permute.xlu0 %1155
        %v1158 = vmul.f32 %v1137, %v1156
        %1160 = vrot.lane.b32.xlu0 %v1158, 105
        %v1161 = vpop.permute.xlu0 %1160
        %v1163 = vsub.f32 %v1096, %v1161
        %v1164 = vmul.f32 %v1143, %v1143
        %v1165 = vmul.f32 %v1153, %v1153
        %1167 = vrot.lane.b32.xlu0 %v1165, 86
        %v1168 = vpop.permute.xlu0 %1167
        %v1170 = vadd.f32 %v1164, %v1168
        %v1171 = vmul.f32 %v1163, %v1163
        %1173 = vrot.lane.b32.xlu0 %v1171, 44
        %v1174 = vpop.permute.xlu0 %1173
        %v1176 = vadd.f32 %v1170, %v1174
        %v1177 = vmax.f32 %v1176, 1e-24
        %v1178 = vrsqrt.pop %v1177
        %v1179 = vmul.f32 %v1143, %v1178
        %1181 = vrot.lane.b32.xlu0 %v1178, 42
        %v1182 = vpop.permute.xlu0 %1181
        %v1184 = vmul.f32 %v1153, %v1182
        %1185 = vrot.lane.b32.xlu0 %v1178, 84
        %v1186 = vpop.permute.xlu0 %1185
        %v1188 = vmul.f32 %v1163, %v1186
        %1190 = vrot.lane.b32.xlu0 %v1188, 65
        %v1191 = vpop.permute.xlu0 %1190
        %v1193 = vmul.f32 %v1116, %v1191
        %1195 = vrot.lane.b32.xlu0 %v1184, 21
        %v1196 = vpop.permute.xlu0 %1195
        %v1198 = vmul.f32 %v1120, %v1196
        %1200 = vrot.lane.b32.xlu0 %v1198, 86
        %v1201 = vpop.permute.xlu0 %1200
        %v1203 = vsub.f32 %v1193, %v1201
        %1205 = vrot.lane.b32.xlu0 %v1179, 63
        %v1206 = vpop.permute.xlu0 %1205
        %v1208 = vmul.f32 %v1120, %v1206
        %1209 = vrot.lane.b32.xlu0 %v1188, 23
        %v1210 = vpop.permute.xlu0 %1209
        %v1212 = vmul.f32 %v1111, %v1210
        %1214 = vrot.lane.b32.xlu0 %v1212, 84
        %v1215 = vpop.permute.xlu0 %1214
        %v1217 = vsub.f32 %v1208, %v1215
        %1218 = vrot.lane.b32.xlu0 %v1184, 65
        %v1219 = vpop.permute.xlu0 %1218
        %v1221 = vmul.f32 %v1111, %v1219
        %1222 = vrot.lane.b32.xlu0 %v1179, 21
        %v1223 = vpop.permute.xlu0 %1222
        %v1225 = vmul.f32 %v1116, %v1223
        %1227 = vrot.lane.b32.xlu0 %v1225, 86
        %v1228 = vpop.permute.xlu0 %1227
        %v1230 = vsub.f32 %v1221, %v1228
        %1231 = vrot.lane.b32.xlu0 %v1116, 21
        %v1232 = vpop.permute.xlu0 %1231
        %1235 = vrot.lane.b32.xlu0 %v1217, 21
        %v1236 = vpop.permute.xlu0 %1235
        %1238 = vrot.lane.b32.xlu0 %v1120, 42
        %v1239 = vpop.permute.xlu0 %1238
        %1241 = vrot.lane.b32.xlu0 %v1188, 42
        %v1242 = vpop.permute.xlu0 %1241
        %1245 = vrot.lane.b32.xlu0 %v1230, 40
        %v1246 = vpop.permute.xlu0 %1245
        %vm1248 = vcmask 171008
        %v1249 = vsel %vm1248, %v1111, %v1179
        %vm1250 = vcmask 343040
        %v1251 = vsel %vm1250, %v1249, %v1203
        %v1252 = vsel %vm602, %v1251, %v1232
        %vm1253 = vcmask 687104
        %v1254 = vsel %vm1253, %v1252, %v1196
        %vm1255 = vcmask 859136
        %v1256 = vsel %vm1255, %v1254, %v1236
        %vm1257 = vcmask 1031168
        %v1258 = vsel %vm1257, %v1256, %v1239
        %vm1259 = vcmask 154624
        %v1260 = vsel %vm1259, %v1239, %v1242
        %vm1261 = vcmask 326656
        %v1262 = vsel %vm1261, %v1260, %v1246
        %v1263 = vld [vmem:[#allocation2] sm:$0xff]
        %v1264 = vld [vmem:[#allocation2 + $0x8] sm:$0xff]
        %v1265 = vld [vmem:[#allocation2 + $0x10] sm:$0xff]
        %v1266 = vld [vmem:[#allocation2 + $0x18] sm:$0xff]
        %v1267 = vld [vmem:[#allocation2 + $0x20] sm:$0xff]
        %v1268 = vld [vmem:[#allocation2 + $0x28] sm:$0xff]
        %v1269 = vld [vmem:[#allocation2 + $0x30] sm:$0xff]
        %v1270 = vld [vmem:[#allocation2 + $0x38] sm:$0xff]
        %v1271 = vld [vmem:[#allocation2 + $0x40] sm:$0xff]
        %v1272 = vld [vmem:[#allocation2 + $0x48] sm:$0xff]
        %v1273 = vld [vmem:[#allocation2 + $0x50] sm:$0xff]
        %v1274 = vld [vmem:[#allocation2 + $0x58] sm:$0xff]
        %v1275 = vld [vmem:[#allocation2 + $0x60] sm:$0xff]
        %v1276 = vld [vmem:[#allocation2 + $0x68] sm:$0xff]
        %v1277 = vld [vmem:[#allocation2 + $0x70] sm:$0xff]
        %v1278 = vld [vmem:[#allocation2 + $0x78] sm:$0xff]
        %v1279 = vld [vmem:[#allocation2 + $0x80] sm:$0xff]
        %v1280 = vld [vmem:[#allocation2 + $0x88] sm:$0xff]
        %v1281 = vld [vmem:[#allocation2 + $0x90] sm:$0xff]
        %v1282 = vld [vmem:[#allocation2 + $0x98] sm:$0xff]
        %v1283 = vld [vmem:[#allocation2 + $0xa0] sm:$0xff]
        %v1284 = vld [vmem:[#allocation2 + $0xa8] sm:$0xff]
        %v1285 = vld [vmem:[#allocation2 + $0xb0] sm:$0xff]
        %v1286 = vld [vmem:[#allocation2 + $0xb8] sm:$0xff]
        %v1287 = vld [vmem:[#allocation2 + $0xc0] sm:$0xff]
        %v1288 = vld [vmem:[#allocation2 + $0xc8] sm:$0xff]
        %v1289 = vld [vmem:[#allocation2 + $0xd0] sm:$0xff]
        %v1290 = vld [vmem:[#allocation2 + $0xd8] sm:$0xff]
        %v1291 = vld [vmem:[#allocation2 + $0xe0] sm:$0xff]
        %v1292 = vld [vmem:[#allocation2 + $0xe8] sm:$0xff]
        %v1293 = vld [vmem:[#allocation2 + $0xf0] sm:$0xff]
        %v1294 = vld [vmem:[#allocation2 + $0xf8] sm:$0xff]
        %v1295 = vld [vmem:[#allocation2 + $0x100] sm:$0xff]
        %v1296 = vld [vmem:[#allocation2 + $0x108] sm:$0xff]
        %v1297 = vld [vmem:[#allocation2 + $0x110] sm:$0xff]
        %v1298 = vld [vmem:[#allocation2 + $0x118] sm:$0xff]
        %v1299 = vld [vmem:[#allocation2 + $0x120] sm:$0xff]
        %v1300 = vld [vmem:[#allocation2 + $0x128] sm:$0xff]
        %v1301 = vld [vmem:[#allocation2 + $0x130] sm:$0xff]
        %v1302 = vld [vmem:[#allocation2 + $0x138] sm:$0xff]
        %v1303 = vld [vmem:[#allocation2 + $0x140] sm:$0xff]
        %v1304 = vld [vmem:[#allocation2 + $0x148] sm:$0xff]
        %v1305 = vld [vmem:[#allocation2 + $0x150] sm:$0xff]
        %v1306 = vld [vmem:[#allocation2 + $0x158] sm:$0xff]
        %v1307 = vld [vmem:[#allocation2 + $0x160] sm:$0xff]
        %v1308 = vld [vmem:[#allocation2 + $0x168] sm:$0xff]
        %v1309 = vld [vmem:[#allocation2 + $0x170] sm:$0x1f]
        %v1310 = vld [vmem:[#allocation2 + $0x178] sm:$0x1f]
        %vm1311 = vcmask 498688
        %v1313 = vsel %vm1311, %v1262, 0
        %vm1315 = vcmask 1044480
        %v1317 = vsel %vm1315, %v1309, 0
        %v1320 = vsel %vm1315, %v1310, 0
        %1322 = vmatprep.subr.mxu0 %v1264
        %1323 = vmatpush1.msra.mxu0 %v1263
        %1324 = vmatprep.subr.mxu0 %v1266
        %1325 = vmatpush1.msra.mxu0 %v1265
        %1326 = vmatprep.subr.mxu0 %v1268
        %1327 = vmatpush1.msra.mxu0 %v1267
        %1328 = vmatprep.subr.mxu0 %v1270
        %1329 = vmatpush1.msra.mxu0 %v1269
        %1330 = vmatprep.subr.mxu0 %v1272
        %1331 = vmatpush1.msra.mxu0 %v1271
        %1332 = vmatprep.subr.mxu0 %v1274
        %1333 = vmatpush1.msra.mxu0 %v1273
        %1334 = vmatprep.subr.mxu0 %v1276
        %1335 = vmatpush1.msra.mxu0 %v1275
        %1336 = vmatprep.subr.mxu0 %v1278
        %1337 = vmatpush1.msra.mxu0 %v1277
        %1338 = vmatprep.subr.mxu0 %v1280
        %1339 = vmatpush1.msra.mxu0 %v1279
        %1340 = vmatprep.subr.mxu0 %v1282
        %1341 = vmatpush1.msra.mxu0 %v1281
        %1342 = vmatprep.subr.mxu0 %v1284
        %1343 = vmatpush1.msra.mxu0 %v1283
        %1344 = vmatprep.subr.mxu0 %v1286
        %1345 = vmatpush1.msra.mxu0 %v1285
        %1346 = vmatprep.subr.mxu0 %v1288
        %1347 = vmatpush1.msra.mxu0 %v1287
        %1348 = vmatprep.subr.mxu0 %v1290
        %1349 = vmatpush1.msra.mxu0 %v1289
        %1350 = vmatprep.subr.mxu0 %v1292
        %1351 = vmatpush1.msra.mxu0 %v1291
        %1352 = vmatprep.subr.mxu0 %v1294
        %1353 = vmatpush1.msra.mxu0 %v1293
        %1354 = vmatprep.subr.mxu0 %v1296
        %1355 = vmatpush1.msra.mxu0 %v1295
        %1356 = vmatprep.subr.mxu0 %v1298
        %1357 = vmatpush1.msra.mxu0 %v1297
        %1358 = vmatprep.subr.mxu0 %v1300
        %1359 = vmatpush1.msra.mxu0 %v1299
        %1360 = vmatprep.subr.mxu0 %v1302
        %1361 = vmatpush1.msra.mxu0 %v1301
        %1362 = vmatprep.subr.mxu0 %v1304
        %1363 = vmatpush1.msra.mxu0 %v1303
        %1364 = vmatprep.subr.mxu0 %v1306
        %1365 = vmatpush1.msra.mxu0 %v1305
        %1366 = vmatprep.subr.mxu0 %v1308
        %1367 = vmatpush1.msra.mxu0 %v1307
        %1368 = vmatprep.subr.mxu0 %v1320
        %1369 = vmatpush1.msra.mxu0 %v1317
        %1370 = vmatprep.subr.mxu0 0.0
        %1371 = vmatpush1.msra.mxu0 0.0
        %1372 = vmatprep.subr.mxu0 0.0
        %1373 = vmatpush1.msra.mxu0 0.0
        %1374 = vmatprep.subr.mxu0 0.0
        %1375 = vmatpush1.msra.mxu0 0.0
        %1376 = vmatprep.subr.mxu0 0.0
        %1377 = vmatpush1.msra.mxu0 0.0
        %1378 = vmatprep.subr.mxu0 0.0
        %1379 = vmatpush1.msra.mxu0 0.0
        %1380 = vmatprep.subr.mxu0 0.0
        %1381 = vmatpush1.msra.mxu0 0.0
        %1382 = vmatprep.subr.mxu0 0.0
        %1383 = vmatpush1.msra.mxu0 0.0
        %1384 = vmatprep.subr.mxu0 0.0
        %1385 = vmatpush1.msra.mxu0 0.0
        %1386 = vmatprep.mubr.f32.mxu0 %v1313
        %1387 = vmatmul.mubr.f32.gmra.mrb[0].mxu0 %v1258
        %v1388 = vpop.f32.mrb[0].mxu0
        %v1389 = vadd.f32 0.0, %v1388
        %v1390 = vpop.f32.mrb[0].mxu0
        %v1391 = vadd.f32 0.0, %v1390
        %1392 = vdwg.mxu0
        %1393 = vst [vmem:[%s557] sm:$0xff] %v1389
        %1394 = vst.msk [vmem:[%s557 + $0x8] sm:$0xff] %vm1311, %v1391
        %1396 = vrot.lane.b32.xlu0 %v860, 16
        %v1397 = vpop.permute.xlu0 %1396
        %v1399 = vsel %vm880, %v840, %v1397
        %vm1400 = vcmask 261120
        %1401 = vst.msk [vmem:[%s561] sm:$0xff] %vm1400, %v1399
        %p1402 = scmp.lt.s32.totalorder %s29, 1
        %s1403 = scalar_select %p1402, %s29, 1
        %s1404 = smul.addr %s1403, 2
        %s1405 = smul.addr %s1404, 8
        %s1406 = scalar_lea.vmem %s15, %s1405
        %p1407 = scmp.lt.s32.totalorder %s29, 1
        %s1408 = scalar_select %p1407, %s29, 1
        %s1409 = smul.addr %s1408, 8
        %s1410 = scalar_lea.vmem %s16, %s1409
        // Predicated region
        $region85: #{vposer_forward.1} parent=79 // pred_check
          %p1411 = pneg %p372
        $region86: #{vposer_forward.1} parent=79 // pred_check_branch
          %1413 = sbr.rel (%p1411) target = $region88
        $region87: #{vposer_forward.1} parent=79 // pred_region
          _
        $region88: #{vposer_forward.1} parent=79 // pred_fallthru
          _
        // Predicated region
        $region89: #{vposer_forward.1} parent=79 // pred_check
          %p1414 = pneg %p398
        $region90: #{vposer_forward.1} parent=79 // pred_check_branch
          %1416 = sbr.rel (%p1414) target = $region92
        $region91: #{vposer_forward.1} parent=79 // pred_region
          _
        $region92: #{vposer_forward.1} parent=79 // pred_fallthru
          _
      $region80: #{vposer_forward.1} parent=5 // pred_fallthru
        _
      %p1417 = scmp.le.s32.totalorder 2, %s24
      // Predicated region
      $region93: #{vposer_forward.1} parent=5 // pred_check
        %p1418 = pneg %p1417
      $region94: #{vposer_forward.1} parent=5 // pred_check_branch
        %1420 = sbr.rel (%p1418) target = $region96
      $region95: #{vposer_forward.1} parent=5 // pred_region
        %s1421 = ssub.s32 %s24, 2
        // Predicated region
        $region97: #{vposer_forward.1} parent=95 // pred_check
          %p1422 = pneg %p378
        $region98: #{vposer_forward.1} parent=95 // pred_check_branch
          %1424 = sbr.rel (%p1422) target = $region100
        $region99: #{vposer_forward.1} parent=95 // pred_region
          %p1425 = scmp.lt.s32.totalorder %s30, 1
          %s1426 = scalar_select %p1425, %s30, 1
          %s1427 = smul.addr %s1426, 2
          %s1428 = smul.addr %s1427, 8
          %s1429 = scalar_lea.vmem %s15, %s1428
        $region100: #{vposer_forward.1} parent=95 // pred_fallthru
          _
        // Predicated region
        $region101: #{vposer_forward.1} parent=95 // pred_check
          %p1430 = pneg %p404
        $region102: #{vposer_forward.1} parent=95 // pred_check_branch
          %1432 = sbr.rel (%p1430) target = $region104
        $region103: #{vposer_forward.1} parent=95 // pred_region
          %p1433 = scmp.lt.s32.totalorder %s30, 1
          %s1434 = scalar_select %p1433, %s30, 1
          %s1435 = smul.addr %s1434, 8
          %s1436 = scalar_lea.vmem %s16, %s1435
        $region104: #{vposer_forward.1} parent=95 // pred_fallthru
          _
      $region96: #{vposer_forward.1} parent=5 // pred_fallthru
        _
    $region6: #{vposer_forward.1} parent=1 // loop_footer
      %s28 = sadd.s32 1, %s24
    $region7: #{vposer_forward.1} parent=1 // loop_footer_branch
      %23 = sbr.rel target = $region3
    $region8: #{vposer_forward.1} parent=1 // loop_exit
      _
    %1437 = vsyncpa [#allocation3], 1
    %s1438 = scalar_lea.sflag [#allocation3], 1
    %1439 = vsyncpa %s1438, 1

</llo_original>
